<compile_context>
chip_gen: v5e
topology: v5e:2x2
jax: 0.10.0
libtpu: 0.0.40
codegen_flags: <defaults>
</compile_context>

<pallas_src>
import jax
import jax.numpy as jnp
from jax import lax
from jax.experimental import pallas as pl
from jax.experimental.pallas import tpu as pltpu

SUBLANE = 8


def lstm_fc_kernel(g0_ref, whh0_ref, wih1_ref, whh1_ref, b1_ref,
                   wfc_ref, bfc_ref, out_ref):
    """2-layer LSTM recurrence + FC head for one batch tile.

    g0_ref   : [T, TB, 4H] f32  layer-0 input projection (bias + 0.5 i/f/o pre-scale
                                 already folded in, computed in the wrapper)
    whh0_ref : [H, 4H] bf16     layer-0 recurrent weights (pre-scaled columns)
    wih1_ref : [H, 4H] bf16     layer-1 input weights      (pre-scaled columns)
    whh1_ref : [H, 4H] bf16     layer-1 recurrent weights  (pre-scaled columns)
    b1_ref   : [1, 4H] f32      fused b_ih1 + b_hh1 (pre-scaled columns)
    wfc_ref  : [1, H]  f32      bfc_ref : [1, 1] f32
    out_ref  : [TB, 1] f32
    """
    T, TB, G = g0_ref.shape
    H = whh0_ref.shape[0]

    # bf16 HBM storage -> f32 vregs once (MXU operands stay f32, activations f32).
    whh0 = whh0_ref[...].astype(jnp.float32)
    wih1 = wih1_ref[...].astype(jnp.float32)
    whh1 = whh1_ref[...].astype(jnp.float32)

    # Hoisted broadcasts (JAX does not CSE broadcast_in_dim inside the loop).
    b1b = jnp.broadcast_to(b1_ref[...], (TB, G))

    # Post-tanh affine fixup constants: i/f/o columns -> 0.5*t + 0.5 (== sigmoid of the
    # un-scaled preactivation, since the 0.5 pre-scale is folded into the weights);
    # g columns -> t (tanh). Built once, full vreg width.
    col = lax.broadcasted_iota(jnp.int32, (TB, G), 1)
    is_g = (col >= 2 * H) & (col < 3 * H)
    post_scale = jnp.where(is_g, jnp.float32(1.0), jnp.float32(0.5))
    post_off = jnp.where(is_g, jnp.float32(0.0), jnp.float32(0.5))

    # Projected layer-0 gates for all timesteps, kept as a value (8 vregs at toy shapes).
    g0_all = g0_ref[...]

    def cell(z, c_prev):
        # Single full-width EUP pass + one full-width VPU FMA, then per-gate slices.
        a = jnp.tanh(z) * post_scale + post_off
        i = a[:, 0 * H:1 * H]
        f = a[:, 1 * H:2 * H]
        g = a[:, 2 * H:3 * H]
        o = a[:, 3 * H:4 * H]
        c_new = f * c_prev + i * g
        h_new = o * jnp.tanh(c_new)
        return h_new, c_new

    zeros = jnp.zeros((TB, H), dtype=jnp.float32)
    h0, c0, h1, c1 = zeros, zeros, zeros, zeros

    # T is small and static: straight-line unroll with static slices keeps everything
    # in vregs (no per-step VMEM scratch round-trip, no dynamic-slice on values).
    for t in range(T):
        # layer 0: input projection already done; only the recurrent matmul remains.
        z0 = g0_all[t] + jnp.dot(h0, whh0, preferred_element_type=jnp.float32)
        h0, c0 = cell(z0, c0)
        # (dropout between layers is identity in eval mode)
        # layer 1: two accumulating dots, no per-step lane concat.
        z1 = (b1b
              + jnp.dot(h0, wih1, preferred_element_type=jnp.float32)
              + jnp.dot(h1, whh1, preferred_element_type=jnp.float32))
        h1, c1 = cell(z1, c1)

    # FC head (output_dim == 1): VPU multiply + lane reduction, no N=1 MXU matmul.
    out = jnp.sum(h1 * wfc_ref[...], axis=-1, keepdims=True) + bfc_ref[...]
    out_ref[...] = out.astype(out_ref.dtype)


def simple_time_series_forward(x, params):
    """x: [B, T, D] float32.  Returns [B, output_dim]."""
    B, T, D = x.shape
    H = params["whh0"].shape[0]
    O = params["wfc"].shape[0]
    # TODO(synk): O > 1 head would use an MXU matmul; module default output_dim=1
    # uses the cheaper VPU lane reduction implemented in the kernel.
    assert O == 1, "kernel FC head is specialized for output_dim == 1"

    # One sublane-multiple batch tile per grid step; batch axis is "parallel" so v7x's
    # second TensorCore splits it (neutral on v5e/v6e).
    tile_b = min(max(SUBLANE, pl.cdiv(B, SUBLANE) * SUBLANE), 64)
    Bp = pl.cdiv(B, tile_b) * tile_b

    # Layer-0 input projection as a plain XLA gemm in the wrapper: a [*,4]@[4,4H] dot is
    # ~3% MXU fill and off the recurrence critical path, so keep it out of the kernel.
    # Output is time-major [T, Bp, 4H]; batch padded rows compute garbage that is
    # sliced off at the end (rows are independent).
    g0 = jnp.einsum("btd,dh->tbh", x, params["wih0"]) + params["b0"]   # [T, B, 4H]
    g0 = jnp.pad(g0, ((0, 0), (0, Bp - B), (0, 0)))                    # [T, Bp, 4H]

    grid = (Bp // tile_b,)
    out = pl.pallas_call(
        lstm_fc_kernel,
        out_shape=jax.ShapeDtypeStruct((Bp, O), jnp.float32),
        grid_spec=pltpu.PrefetchScalarGridSpec(
            num_scalar_prefetch=0,
            grid=grid,
            in_specs=[
                pl.BlockSpec((T, tile_b, 4 * H), lambda b: (0, b, 0)),  # g0
                pl.BlockSpec((H, 4 * H), lambda b: (0, 0)),             # whh0 (bf16)
                pl.BlockSpec((H, 4 * H), lambda b: (0, 0)),             # wih1 (bf16)
                pl.BlockSpec((H, 4 * H), lambda b: (0, 0)),             # whh1 (bf16)
                pl.BlockSpec((1, 4 * H), lambda b: (0, 0)),             # b1
                pl.BlockSpec((1, H), lambda b: (0, 0)),                 # wfc
                pl.BlockSpec((1, O), lambda b: (0, 0)),                 # bfc
            ],
            out_specs=pl.BlockSpec((tile_b, O), lambda b: (b, 0)),
        ),
        compiler_params=pltpu.CompilerParams(
            dimension_semantics=("parallel",)),
    )(g0, params["whh0"], params["wih1"], params["whh1"],
      params["b1"], params["wfc"], params["bfc"])
    return out[:B]


def init_params(key, input_dim, hidden_dim, output_dim):
    """Deterministic init matching PyTorch LSTM/Linear shapes, then pre-processed:

    PyTorch stores weight_ih_l{k}: [4H, in_k], weight_hh_l{k}: [4H, H],
    bias_ih/bias_hh: [4H] (gate row order i, f, g, o); Linear: weight [O, H], bias [O].

    Pre-processing for the kernel:
      * transpose to right-multiply layouts, fuse bias_ih + bias_hh,
      * fold the 0.5 pre-scale of the i/f/o gate columns into weights and biases
        (enables the single-tanh gate activation: sigmoid(x) = 0.5*tanh(0.5x) + 0.5),
      * store the three recurrent/hidden weight matrices in bf16 (DMA payload only).
    """
    H = hidden_dim
    k = 1.0 / jnp.sqrt(jnp.float32(H))
    keys = jax.random.split(key, 10)

    def u(kk, shape):
        return jax.random.uniform(kk, shape, jnp.float32, -k, k)

    # layer 0
    w_ih0 = u(keys[0], (4 * H, input_dim))
    w_hh0 = u(keys[1], (4 * H, H))
    b_ih0 = u(keys[2], (4 * H,))
    b_hh0 = u(keys[3], (4 * H,))
    # layer 1
    w_ih1 = u(keys[4], (4 * H, H))
    w_hh1 = u(keys[5], (4 * H, H))
    b_ih1 = u(keys[6], (4 * H,))
    b_hh1 = u(keys[7], (4 * H,))
    # fc
    w_fc = jax.random.uniform(keys[8], (output_dim, H), jnp.float32, -k, k)
    b_fc = jax.random.uniform(keys[9], (output_dim,), jnp.float32, -k, k)

    # 0.5 on i/f/o gate columns, 1.0 on g columns (PyTorch gate order i, f, g, o).
    pre = jnp.concatenate([jnp.full((H,), 0.5, jnp.float32),
                           jnp.full((H,), 0.5, jnp.float32),
                           jnp.full((H,), 1.0, jnp.float32),
                           jnp.full((H,), 0.5, jnp.float32)])

    return {
        "wih0": w_ih0.T * pre[None, :],                              # [D, 4H] f32 (wrapper gemm)
        "b0": ((b_ih0 + b_hh0) * pre).reshape(1, 4 * H),             # [1, 4H] f32
        "whh0": (w_hh0.T * pre[None, :]).astype(jnp.bfloat16),       # [H, 4H] bf16
        "wih1": (w_ih1.T * pre[None, :]).astype(jnp.bfloat16),       # [H, 4H] bf16
        "whh1": (w_hh1.T * pre[None, :]).astype(jnp.bfloat16),       # [H, 4H] bf16
        "b1": ((b_ih1 + b_hh1) * pre).reshape(1, 4 * H),             # [1, 4H] f32
        "wfc": w_fc,                                                 # [O, H] f32 (O == 1)
        "bfc": b_fc.reshape(1, output_dim),                          # [1, O] f32
    }


if __name__ == "__main__":
    # Small shapes consistent with the module's forward: [batch, seq, input_dim]
    batch, seq_len, input_dim = 2, 8, 4
    hidden_dim, output_dim = 32, 1

    key = jax.random.PRNGKey(0)
    kx, kp = jax.random.split(key)
    x = jax.random.normal(kx, (batch, seq_len, input_dim), dtype=jnp.float32)
    params = init_params(kp, input_dim, hidden_dim, output_dim)

    out = simple_time_series_forward(x, params)
    out = jax.block_until_ready(out)
    assert out.shape == (batch, output_dim), out.shape
    print("KERNEL_OK")
</pallas_src>

<mosaic_0001>
module attributes {stable_mosaic.version = 11 : i64} {
  func.func @lstm_fc_kernel(%arg0: i32, %arg1: memref<8x8x128xf32, #tpu.memory_space<vmem>>, %arg2: memref<32x128xbf16, #tpu.memory_space<vmem>>, %arg3: memref<32x128xbf16, #tpu.memory_space<vmem>>, %arg4: memref<32x128xbf16, #tpu.memory_space<vmem>>, %arg5: memref<1x128xf32, #tpu.memory_space<vmem>>, %arg6: memref<1x32xf32, #tpu.memory_space<vmem>>, %arg7: memref<1x1xf32, #tpu.memory_space<vmem>>, %arg8: memref<8x1xf32, #tpu.memory_space<vmem>>) attributes {dimension_semantics = [#tpu.dimension_semantics<parallel>], iteration_bounds = array<i64: 1>, scalar_prefetch = 0 : i64, scratch_operands = 0 : i64, tpu.core_type = #tpu.core_type<tc>, window_params = [{transform_indices = @transform_0, window_bounds = array<i64: 8, 8, 128>}, {pipeline_mode = #tpu.pipeline_mode<synchronous>, transform_indices = @transform_1, window_bounds = array<i64: 32, 128>}, {pipeline_mode = #tpu.pipeline_mode<synchronous>, transform_indices = @transform_2, window_bounds = array<i64: 32, 128>}, {pipeline_mode = #tpu.pipeline_mode<synchronous>, transform_indices = @transform_3, window_bounds = array<i64: 32, 128>}, {pipeline_mode = #tpu.pipeline_mode<synchronous>, transform_indices = @transform_4, window_bounds = array<i64: 1, 128>}, {pipeline_mode = #tpu.pipeline_mode<synchronous>, transform_indices = @transform_5, window_bounds = array<i64: 1, 32>}, {pipeline_mode = #tpu.pipeline_mode<synchronous>, transform_indices = @transform_6, window_bounds = array<i64: 1, 1>}, {transform_indices = @transform_7, window_bounds = array<i64: 8, 1>}]} {
    %c0 = arith.constant 0 : index
    %c0_0 = arith.constant 0 : index
    %0 = vector.load %arg2[%c0, %c0_0] : memref<32x128xbf16, #tpu.memory_space<vmem>>, vector<32x128xbf16>
    %1 = arith.extf %0 : vector<32x128xbf16> to vector<32x128xf32>
    %c0_1 = arith.constant 0 : index
    %c0_2 = arith.constant 0 : index
    %2 = vector.load %arg3[%c0_1, %c0_2] : memref<32x128xbf16, #tpu.memory_space<vmem>>, vector<32x128xbf16>
    %3 = arith.extf %2 : vector<32x128xbf16> to vector<32x128xf32>
    %c0_3 = arith.constant 0 : index
    %c0_4 = arith.constant 0 : index
    %4 = vector.load %arg4[%c0_3, %c0_4] : memref<32x128xbf16, #tpu.memory_space<vmem>>, vector<32x128xbf16>
    %5 = arith.extf %4 : vector<32x128xbf16> to vector<32x128xf32>
    %c0_5 = arith.constant 0 : index
    %c0_6 = arith.constant 0 : index
    %6 = vector.load %arg5[%c0_5, %c0_6] : memref<1x128xf32, #tpu.memory_space<vmem>>, vector<1x128xf32>
    %7 = vector.shape_cast %6 : vector<1x128xf32> to vector<1x128xf32>
    %8 = vector.broadcast %7 : vector<1x128xf32> to vector<8x128xf32>
    %9 = tpu.iota {dimensions = array<i32: 1>} : vector<8x128xi32>
    %c64_i32 = arith.constant 64 : i32
    %10 = vector.broadcast %c64_i32 : i32 to vector<8x128xi32>
    %11 = arith.cmpi sge, %9, %10 : vector<8x128xi32>
    %c96_i32 = arith.constant 96 : i32
    %12 = vector.broadcast %c96_i32 : i32 to vector<8x128xi32>
    %13 = arith.cmpi slt, %9, %12 : vector<8x128xi32>
    %14 = arith.andi %11, %13 : vector<8x128xi1>
    %cst = arith.constant 1.000000e+00 : f32
    %cst_7 = arith.constant 5.000000e-01 : f32
    %15 = vector.broadcast %cst : f32 to vector<8x128xf32>
    %16 = vector.broadcast %cst_7 : f32 to vector<8x128xf32>
    %17 = arith.select %14, %15, %16 : vector<8x128xi1>, vector<8x128xf32>
    %cst_8 = arith.constant 0.000000e+00 : f32
    %cst_9 = arith.constant 5.000000e-01 : f32
    %18 = vector.broadcast %cst_8 : f32 to vector<8x128xf32>
    %19 = vector.broadcast %cst_9 : f32 to vector<8x128xf32>
    %20 = arith.select %14, %18, %19 : vector<8x128xi1>, vector<8x128xf32>
    %c0_10 = arith.constant 0 : index
    %c0_11 = arith.constant 0 : index
    %c0_12 = arith.constant 0 : index
    %21 = vector.load %arg1[%c0_10, %c0_11, %c0_12] : memref<8x8x128xf32, #tpu.memory_space<vmem>>, vector<8x8x128xf32>
    %cst_13 = arith.constant 0.000000e+00 : f32
    %22 = vector.broadcast %cst_13 : f32 to vector<8x32xf32>
    %23 = vector.extract_strided_slice %21 {offsets = [0, 0, 0], sizes = [1, 8, 128], strides = [1, 1, 1]} : vector<8x8x128xf32> to vector<1x8x128xf32>
    %24 = vector.shape_cast %23 : vector<1x8x128xf32> to vector<8x128xf32>
    %cst_14 = arith.constant dense<0.000000e+00> : vector<8x128xf32>
    %25 = tpu.matmul %22, %1, %cst_14 {dimension_numbers = #tpu.dot_dimension_numbers<[1], [0], [0], [1], [0, 0, 1, 1], [], []>} : vector<8x32xf32>, vector<32x128xf32>, vector<8x128xf32> -> vector<8x128xf32>
    %26 = arith.addf %24, %25 : vector<8x128xf32>
    %27 = math.tanh %26 : vector<8x128xf32>
    %28 = arith.mulf %27, %17 : vector<8x128xf32>
    %29 = arith.addf %28, %20 : vector<8x128xf32>
    %30 = vector.extract_strided_slice %29 {offsets = [0, 0], sizes = [8, 32], strides = [1, 1]} : vector<8x128xf32> to vector<8x32xf32>
    %31 = vector.extract_strided_slice %29 {offsets = [0, 32], sizes = [8, 32], strides = [1, 1]} : vector<8x128xf32> to vector<8x32xf32>
    %32 = vector.extract_strided_slice %29 {offsets = [0, 64], sizes = [8, 32], strides = [1, 1]} : vector<8x128xf32> to vector<8x32xf32>
    %33 = vector.extract_strided_slice %29 {offsets = [0, 96], sizes = [8, 32], strides = [1, 1]} : vector<8x128xf32> to vector<8x32xf32>
    %34 = arith.mulf %31, %22 : vector<8x32xf32>
    %35 = arith.mulf %30, %32 : vector<8x32xf32>
    %36 = arith.addf %34, %35 : vector<8x32xf32>
    %37 = math.tanh %36 : vector<8x32xf32>
    %38 = arith.mulf %33, %37 : vector<8x32xf32>
    %cst_15 = arith.constant dense<0.000000e+00> : vector<8x128xf32>
    %39 = tpu.matmul %38, %3, %cst_15 {dimension_numbers = #tpu.dot_dimension_numbers<[1], [0], [0], [1], [0, 0, 1, 1], [], []>} : vector<8x32xf32>, vector<32x128xf32>, vector<8x128xf32> -> vector<8x128xf32>
    %40 = arith.addf %8, %39 : vector<8x128xf32>
    %cst_16 = arith.constant dense<0.000000e+00> : vector<8x128xf32>
    %41 = tpu.matmul %22, %5, %cst_16 {dimension_numbers = #tpu.dot_dimension_numbers<[1], [0], [0], [1], [0, 0, 1, 1], [], []>} : vector<8x32xf32>, vector<32x128xf32>, vector<8x128xf32> -> vector<8x128xf32>
    %42 = arith.addf %40, %41 : vector<8x128xf32>
    %43 = math.tanh %42 : vector<8x128xf32>
    %44 = arith.mulf %43, %17 : vector<8x128xf32>
    %45 = arith.addf %44, %20 : vector<8x128xf32>
    %46 = vector.extract_strided_slice %45 {offsets = [0, 0], sizes = [8, 32], strides = [1, 1]} : vector<8x128xf32> to vector<8x32xf32>
    %47 = vector.extract_strided_slice %45 {offsets = [0, 32], sizes = [8, 32], strides = [1, 1]} : vector<8x128xf32> to vector<8x32xf32>
    %48 = vector.extract_strided_slice %45 {offsets = [0, 64], sizes = [8, 32], strides = [1, 1]} : vector<8x128xf32> to vector<8x32xf32>
    %49 = vector.extract_strided_slice %45 {offsets = [0, 96], sizes = [8, 32], strides = [1, 1]} : vector<8x128xf32> to vector<8x32xf32>
    %50 = arith.mulf %47, %22 : vector<8x32xf32>
    %51 = arith.mulf %46, %48 : vector<8x32xf32>
    %52 = arith.addf %50, %51 : vector<8x32xf32>
    %53 = math.tanh %52 : vector<8x32xf32>
    %54 = arith.mulf %49, %53 : vector<8x32xf32>
    %55 = vector.extract_strided_slice %21 {offsets = [1, 0, 0], sizes = [1, 8, 128], strides = [1, 1, 1]} : vector<8x8x128xf32> to vector<1x8x128xf32>
    %56 = vector.shape_cast %55 : vector<1x8x128xf32> to vector<8x128xf32>
    %cst_17 = arith.constant dense<0.000000e+00> : vector<8x128xf32>
    %57 = tpu.matmul %38, %1, %cst_17 {dimension_numbers = #tpu.dot_dimension_numbers<[1], [0], [0], [1], [0, 0, 1, 1], [], []>} : vector<8x32xf32>, vector<32x128xf32>, vector<8x128xf32> -> vector<8x128xf32>
    %58 = arith.addf %56, %57 : vector<8x128xf32>
    %59 = math.tanh %58 : vector<8x128xf32>
    %60 = arith.mulf %59, %17 : vector<8x128xf32>
    %61 = arith.addf %60, %20 : vector<8x128xf32>
    %62 = vector.extract_strided_slice %61 {offsets = [0, 0], sizes = [8, 32], strides = [1, 1]} : vector<8x128xf32> to vector<8x32xf32>
    %63 = vector.extract_strided_slice %61 {offsets = [0, 32], sizes = [8, 32], strides = [1, 1]} : vector<8x128xf32> to vector<8x32xf32>
    %64 = vector.extract_strided_slice %61 {offsets = [0, 64], sizes = [8, 32], strides = [1, 1]} : vector<8x128xf32> to vector<8x32xf32>
    %65 = vector.extract_strided_slice %61 {offsets = [0, 96], sizes = [8, 32], strides = [1, 1]} : vector<8x128xf32> to vector<8x32xf32>
    %66 = arith.mulf %63, %36 : vector<8x32xf32>
    %67 = arith.mulf %62, %64 : vector<8x32xf32>
    %68 = arith.addf %66, %67 : vector<8x32xf32>
    %69 = math.tanh %68 : vector<8x32xf32>
    %70 = arith.mulf %65, %69 : vector<8x32xf32>
    %cst_18 = arith.constant dense<0.000000e+00> : vector<8x128xf32>
    %71 = tpu.matmul %70, %3, %cst_18 {dimension_numbers = #tpu.dot_dimension_numbers<[1], [0], [0], [1], [0, 0, 1, 1], [], []>} : vector<8x32xf32>, vector<32x128xf32>, vector<8x128xf32> -> vector<8x128xf32>
    %72 = arith.addf %8, %71 : vector<8x128xf32>
    %cst_19 = arith.constant dense<0.000000e+00> : vector<8x128xf32>
    %73 = tpu.matmul %54, %5, %cst_19 {dimension_numbers = #tpu.dot_dimension_numbers<[1], [0], [0], [1], [0, 0, 1, 1], [], []>} : vector<8x32xf32>, vector<32x128xf32>, vector<8x128xf32> -> vector<8x128xf32>
    %74 = arith.addf %72, %73 : vector<8x128xf32>
    %75 = math.tanh %74 : vector<8x128xf32>
    %76 = arith.mulf %75, %17 : vector<8x128xf32>
    %77 = arith.addf %76, %20 : vector<8x128xf32>
    %78 = vector.extract_strided_slice %77 {offsets = [0, 0], sizes = [8, 32], strides = [1, 1]} : vector<8x128xf32> to vector<8x32xf32>
    %79 = vector.extract_strided_slice %77 {offsets = [0, 32], sizes = [8, 32], strides = [1, 1]} : vector<8x128xf32> to vector<8x32xf32>
    %80 = vector.extract_strided_slice %77 {offsets = [0, 64], sizes = [8, 32], strides = [1, 1]} : vector<8x128xf32> to vector<8x32xf32>
    %81 = vector.extract_strided_slice %77 {offsets = [0, 96], sizes = [8, 32], strides = [1, 1]} : vector<8x128xf32> to vector<8x32xf32>
    %82 = arith.mulf %79, %52 : vector<8x32xf32>
    %83 = arith.mulf %78, %80 : vector<8x32xf32>
    %84 = arith.addf %82, %83 : vector<8x32xf32>
    %85 = math.tanh %84 : vector<8x32xf32>
    %86 = arith.mulf %81, %85 : vector<8x32xf32>
    %87 = vector.extract_strided_slice %21 {offsets = [2, 0, 0], sizes = [1, 8, 128], strides = [1, 1, 1]} : vector<8x8x128xf32> to vector<1x8x128xf32>
    %88 = vector.shape_cast %87 : vector<1x8x128xf32> to vector<8x128xf32>
    %cst_20 = arith.constant dense<0.000000e+00> : vector<8x128xf32>
    %89 = tpu.matmul %70, %1, %cst_20 {dimension_numbers = #tpu.dot_dimension_numbers<[1], [0], [0], [1], [0, 0, 1, 1], [], []>} : vector<8x32xf32>, vector<32x128xf32>, vector<8x128xf32> -> vector<8x128xf32>
    %90 = arith.addf %88, %89 : vector<8x128xf32>
    %91 = math.tanh %90 : vector<8x128xf32>
    %92 = arith.mulf %91, %17 : vector<8x128xf32>
    %93 = arith.addf %92, %20 : vector<8x128xf32>
    %94 = vector.extract_strided_slice %93 {offsets = [0, 0], sizes = [8, 32], strides = [1, 1]} : vector<8x128xf32> to vector<8x32xf32>
    %95 = vector.extract_strided_slice %93 {offsets = [0, 32], sizes = [8, 32], strides = [1, 1]} : vector<8x128xf32> to vector<8x32xf32>
    %96 = vector.extract_strided_slice %93 {offsets = [0, 64], sizes = [8, 32], strides = [1, 1]} : vector<8x128xf32> to vector<8x32xf32>
    %97 = vector.extract_strided_slice %93 {offsets = [0, 96], sizes = [8, 32], strides = [1, 1]} : vector<8x128xf32> to vector<8x32xf32>
    %98 = arith.mulf %95, %68 : vector<8x32xf32>
    %99 = arith.mulf %94, %96 : vector<8x32xf32>
    %100 = arith.addf %98, %99 : vector<8x32xf32>
    %101 = math.tanh %100 : vector<8x32xf32>
    %102 = arith.mulf %97, %101 : vector<8x32xf32>
    %cst_21 = arith.constant dense<0.000000e+00> : vector<8x128xf32>
    %103 = tpu.matmul %102, %3, %cst_21 {dimension_numbers = #tpu.dot_dimension_numbers<[1], [0], [0], [1], [0, 0, 1, 1], [], []>} : vector<8x32xf32>, vector<32x128xf32>, vector<8x128xf32> -> vector<8x128xf32>
    %104 = arith.addf %8, %103 : vector<8x128xf32>
    %cst_22 = arith.constant dense<0.000000e+00> : vector<8x128xf32>
    %105 = tpu.matmul %86, %5, %cst_22 {dimension_numbers = #tpu.dot_dimension_numbers<[1], [0], [0], [1], [0, 0, 1, 1], [], []>} : vector<8x32xf32>, vector<32x128xf32>, vector<8x128xf32> -> vector<8x128xf32>
    %106 = arith.addf %104, %105 : vector<8x128xf32>
    %107 = math.tanh %106 : vector<8x128xf32>
    %108 = arith.mulf %107, %17 : vector<8x128xf32>
    %109 = arith.addf %108, %20 : vector<8x128xf32>
    %110 = vector.extract_strided_slice %109 {offsets = [0, 0], sizes = [8, 32], strides = [1, 1]} : vector<8x128xf32> to vector<8x32xf32>
    %111 = vector.extract_strided_slice %109 {offsets = [0, 32], sizes = [8, 32], strides = [1, 1]} : vector<8x128xf32> to vector<8x32xf32>
    %112 = vector.extract_strided_slice %109 {offsets = [0, 64], sizes = [8, 32], strides = [1, 1]} : vector<8x128xf32> to vector<8x32xf32>
    %113 = vector.extract_strided_slice %109 {offsets = [0, 96], sizes = [8, 32], strides = [1, 1]} : vector<8x128xf32> to vector<8x32xf32>
    %114 = arith.mulf %111, %84 : vector<8x32xf32>
    %115 = arith.mulf %110, %112 : vector<8x32xf32>
    %116 = arith.addf %114, %115 : vector<8x32xf32>
    %117 = math.tanh %116 : vector<8x32xf32>
    %118 = arith.mulf %113, %117 : vector<8x32xf32>
    %119 = vector.extract_strided_slice %21 {offsets = [3, 0, 0], sizes = [1, 8, 128], strides = [1, 1, 1]} : vector<8x8x128xf32> to vector<1x8x128xf32>
    %120 = vector.shape_cast %119 : vector<1x8x128xf32> to vector<8x128xf32>
    %cst_23 = arith.constant dense<0.000000e+00> : vector<8x128xf32>
    %121 = tpu.matmul %102, %1, %cst_23 {dimension_numbers = #tpu.dot_dimension_numbers<[1], [0], [0], [1], [0, 0, 1, 1], [], []>} : vector<8x32xf32>, vector<32x128xf32>, vector<8x128xf32> -> vector<8x128xf32>
    %122 = arith.addf %120, %121 : vector<8x128xf32>
    %123 = math.tanh %122 : vector<8x128xf32>
    %124 = arith.mulf %123, %17 : vector<8x128xf32>
    %125 = arith.addf %124, %20 : vector<8x128xf32>
    %126 = vector.extract_strided_slice %125 {offsets = [0, 0], sizes = [8, 32], strides = [1, 1]} : vector<8x128xf32> to vector<8x32xf32>
    %127 = vector.extract_strided_slice %125 {offsets = [0, 32], sizes = [8, 32], strides = [1, 1]} : vector<8x128xf32> to vector<8x32xf32>
    %128 = vector.extract_strided_slice %125 {offsets = [0, 64], sizes = [8, 32], strides = [1, 1]} : vector<8x128xf32> to vector<8x32xf32>
    %129 = vector.extract_strided_slice %125 {offsets = [0, 96], sizes = [8, 32], strides = [1, 1]} : vector<8x128xf32> to vector<8x32xf32>
    %130 = arith.mulf %127, %100 : vector<8x32xf32>
    %131 = arith.mulf %126, %128 : vector<8x32xf32>
    %132 = arith.addf %130, %131 : vector<8x32xf32>
    %133 = math.tanh %132 : vector<8x32xf32>
    %134 = arith.mulf %129, %133 : vector<8x32xf32>
    %cst_24 = arith.constant dense<0.000000e+00> : vector<8x128xf32>
    %135 = tpu.matmul %134, %3, %cst_24 {dimension_numbers = #tpu.dot_dimension_numbers<[1], [0], [0], [1], [0, 0, 1, 1], [], []>} : vector<8x32xf32>, vector<32x128xf32>, vector<8x128xf32> -> vector<8x128xf32>
    %136 = arith.addf %8, %135 : vector<8x128xf32>
    %cst_25 = arith.constant dense<0.000000e+00> : vector<8x128xf32>
    %137 = tpu.matmul %118, %5, %cst_25 {dimension_numbers = #tpu.dot_dimension_numbers<[1], [0], [0], [1], [0, 0, 1, 1], [], []>} : vector<8x32xf32>, vector<32x128xf32>, vector<8x128xf32> -> vector<8x128xf32>
    %138 = arith.addf %136, %137 : vector<8x128xf32>
    %139 = math.tanh %138 : vector<8x128xf32>
    %140 = arith.mulf %139, %17 : vector<8x128xf32>
    %141 = arith.addf %140, %20 : vector<8x128xf32>
    %142 = vector.extract_strided_slice %141 {offsets = [0, 0], sizes = [8, 32], strides = [1, 1]} : vector<8x128xf32> to vector<8x32xf32>
    %143 = vector.extract_strided_slice %141 {offsets = [0, 32], sizes = [8, 32], strides = [1, 1]} : vector<8x128xf32> to vector<8x32xf32>
    %144 = vector.extract_strided_slice %141 {offsets = [0, 64], sizes = [8, 32], strides = [1, 1]} : vector<8x128xf32> to vector<8x32xf32>
    %145 = vector.extract_strided_slice %141 {offsets = [0, 96], sizes = [8, 32], strides = [1, 1]} : vector<8x128xf32> to vector<8x32xf32>
    %146 = arith.mulf %143, %116 : vector<8x32xf32>
    %147 = arith.mulf %142, %144 : vector<8x32xf32>
    %148 = arith.addf %146, %147 : vector<8x32xf32>
    %149 = math.tanh %148 : vector<8x32xf32>
    %150 = arith.mulf %145, %149 : vector<8x32xf32>
    %151 = vector.extract_strided_slice %21 {offsets = [4, 0, 0], sizes = [1, 8, 128], strides = [1, 1, 1]} : vector<8x8x128xf32> to vector<1x8x128xf32>
    %152 = vector.shape_cast %151 : vector<1x8x128xf32> to vector<8x128xf32>
    %cst_26 = arith.constant dense<0.000000e+00> : vector<8x128xf32>
    %153 = tpu.matmul %134, %1, %cst_26 {dimension_numbers = #tpu.dot_dimension_numbers<[1], [0], [0], [1], [0, 0, 1, 1], [], []>} : vector<8x32xf32>, vector<32x128xf32>, vector<8x128xf32> -> vector<8x128xf32>
    %154 = arith.addf %152, %153 : vector<8x128xf32>
    %155 = math.tanh %154 : vector<8x128xf32>
    %156 = arith.mulf %155, %17 : vector<8x128xf32>
    %157 = arith.addf %156, %20 : vector<8x128xf32>
    %158 = vector.extract_strided_slice %157 {offsets = [0, 0], sizes = [8, 32], strides = [1, 1]} : vector<8x128xf32> to vector<8x32xf32>
    %159 = vector.extract_strided_slice %157 {offsets = [0, 32], sizes = [8, 32], strides = [1, 1]} : vector<8x128xf32> to vector<8x32xf32>
    %160 = vector.extract_strided_slice %157 {offsets = [0, 64], sizes = [8, 32], strides = [1, 1]} : vector<8x128xf32> to vector<8x32xf32>
    %161 = vector.extract_strided_slice %157 {offsets = [0, 96], sizes = [8, 32], strides = [1, 1]} : vector<8x128xf32> to vector<8x32xf32>
    %162 = arith.mulf %159, %132 : vector<8x32xf32>
    %163 = arith.mulf %158, %160 : vector<8x32xf32>
    %164 = arith.addf %162, %163 : vector<8x32xf32>
    %165 = math.tanh %164 : vector<8x32xf32>
    %166 = arith.mulf %161, %165 : vector<8x32xf32>
    %cst_27 = arith.constant dense<0.000000e+00> : vector<8x128xf32>
    %167 = tpu.matmul %166, %3, %cst_27 {dimension_numbers = #tpu.dot_dimension_numbers<[1], [0], [0], [1], [0, 0, 1, 1], [], []>} : vector<8x32xf32>, vector<32x128xf32>, vector<8x128xf32> -> vector<8x128xf32>
    %168 = arith.addf %8, %167 : vector<8x128xf32>
    %cst_28 = arith.constant dense<0.000000e+00> : vector<8x128xf32>
    %169 = tpu.matmul %150, %5, %cst_28 {dimension_numbers = #tpu.dot_dimension_numbers<[1], [0], [0], [1], [0, 0, 1, 1], [], []>} : vector<8x32xf32>, vector<32x128xf32>, vector<8x128xf32> -> vector<8x128xf32>
    %170 = arith.addf %168, %169 : vector<8x128xf32>
    %171 = math.tanh %170 : vector<8x128xf32>
    %172 = arith.mulf %171, %17 : vector<8x128xf32>
    %173 = arith.addf %172, %20 : vector<8x128xf32>
    %174 = vector.extract_strided_slice %173 {offsets = [0, 0], sizes = [8, 32], strides = [1, 1]} : vector<8x128xf32> to vector<8x32xf32>
    %175 = vector.extract_strided_slice %173 {offsets = [0, 32], sizes = [8, 32], strides = [1, 1]} : vector<8x128xf32> to vector<8x32xf32>
    %176 = vector.extract_strided_slice %173 {offsets = [0, 64], sizes = [8, 32], strides = [1, 1]} : vector<8x128xf32> to vector<8x32xf32>
    %177 = vector.extract_strided_slice %173 {offsets = [0, 96], sizes = [8, 32], strides = [1, 1]} : vector<8x128xf32> to vector<8x32xf32>
    %178 = arith.mulf %175, %148 : vector<8x32xf32>
    %179 = arith.mulf %174, %176 : vector<8x32xf32>
    %180 = arith.addf %178, %179 : vector<8x32xf32>
    %181 = math.tanh %180 : vector<8x32xf32>
    %182 = arith.mulf %177, %181 : vector<8x32xf32>
    %183 = vector.extract_strided_slice %21 {offsets = [5, 0, 0], sizes = [1, 8, 128], strides = [1, 1, 1]} : vector<8x8x128xf32> to vector<1x8x128xf32>
    %184 = vector.shape_cast %183 : vector<1x8x128xf32> to vector<8x128xf32>
    %cst_29 = arith.constant dense<0.000000e+00> : vector<8x128xf32>
    %185 = tpu.matmul %166, %1, %cst_29 {dimension_numbers = #tpu.dot_dimension_numbers<[1], [0], [0], [1], [0, 0, 1, 1], [], []>} : vector<8x32xf32>, vector<32x128xf32>, vector<8x128xf32> -> vector<8x128xf32>
    %186 = arith.addf %184, %185 : vector<8x128xf32>
    %187 = math.tanh %186 : vector<8x128xf32>
    %188 = arith.mulf %187, %17 : vector<8x128xf32>
    %189 = arith.addf %188, %20 : vector<8x128xf32>
    %190 = vector.extract_strided_slice %189 {offsets = [0, 0], sizes = [8, 32], strides = [1, 1]} : vector<8x128xf32> to vector<8x32xf32>
    %191 = vector.extract_strided_slice %189 {offsets = [0, 32], sizes = [8, 32], strides = [1, 1]} : vector<8x128xf32> to vector<8x32xf32>
    %192 = vector.extract_strided_slice %189 {offsets = [0, 64], sizes = [8, 32], strides = [1, 1]} : vector<8x128xf32> to vector<8x32xf32>
    %193 = vector.extract_strided_slice %189 {offsets = [0, 96], sizes = [8, 32], strides = [1, 1]} : vector<8x128xf32> to vector<8x32xf32>
    %194 = arith.mulf %191, %164 : vector<8x32xf32>
    %195 = arith.mulf %190, %192 : vector<8x32xf32>
    %196 = arith.addf %194, %195 : vector<8x32xf32>
    %197 = math.tanh %196 : vector<8x32xf32>
    %198 = arith.mulf %193, %197 : vector<8x32xf32>
    %cst_30 = arith.constant dense<0.000000e+00> : vector<8x128xf32>
    %199 = tpu.matmul %198, %3, %cst_30 {dimension_numbers = #tpu.dot_dimension_numbers<[1], [0], [0], [1], [0, 0, 1, 1], [], []>} : vector<8x32xf32>, vector<32x128xf32>, vector<8x128xf32> -> vector<8x128xf32>
    %200 = arith.addf %8, %199 : vector<8x128xf32>
    %cst_31 = arith.constant dense<0.000000e+00> : vector<8x128xf32>
    %201 = tpu.matmul %182, %5, %cst_31 {dimension_numbers = #tpu.dot_dimension_numbers<[1], [0], [0], [1], [0, 0, 1, 1], [], []>} : vector<8x32xf32>, vector<32x128xf32>, vector<8x128xf32> -> vector<8x128xf32>
    %202 = arith.addf %200, %201 : vector<8x128xf32>
    %203 = math.tanh %202 : vector<8x128xf32>
    %204 = arith.mulf %203, %17 : vector<8x128xf32>
    %205 = arith.addf %204, %20 : vector<8x128xf32>
    %206 = vector.extract_strided_slice %205 {offsets = [0, 0], sizes = [8, 32], strides = [1, 1]} : vector<8x128xf32> to vector<8x32xf32>
    %207 = vector.extract_strided_slice %205 {offsets = [0, 32], sizes = [8, 32], strides = [1, 1]} : vector<8x128xf32> to vector<8x32xf32>
    %208 = vector.extract_strided_slice %205 {offsets = [0, 64], sizes = [8, 32], strides = [1, 1]} : vector<8x128xf32> to vector<8x32xf32>
    %209 = vector.extract_strided_slice %205 {offsets = [0, 96], sizes = [8, 32], strides = [1, 1]} : vector<8x128xf32> to vector<8x32xf32>
    %210 = arith.mulf %207, %180 : vector<8x32xf32>
    %211 = arith.mulf %206, %208 : vector<8x32xf32>
    %212 = arith.addf %210, %211 : vector<8x32xf32>
    %213 = math.tanh %212 : vector<8x32xf32>
    %214 = arith.mulf %209, %213 : vector<8x32xf32>
    %215 = vector.extract_strided_slice %21 {offsets = [6, 0, 0], sizes = [1, 8, 128], strides = [1, 1, 1]} : vector<8x8x128xf32> to vector<1x8x128xf32>
    %216 = vector.shape_cast %215 : vector<1x8x128xf32> to vector<8x128xf32>
    %cst_32 = arith.constant dense<0.000000e+00> : vector<8x128xf32>
    %217 = tpu.matmul %198, %1, %cst_32 {dimension_numbers = #tpu.dot_dimension_numbers<[1], [0], [0], [1], [0, 0, 1, 1], [], []>} : vector<8x32xf32>, vector<32x128xf32>, vector<8x128xf32> -> vector<8x128xf32>
    %218 = arith.addf %216, %217 : vector<8x128xf32>
    %219 = math.tanh %218 : vector<8x128xf32>
    %220 = arith.mulf %219, %17 : vector<8x128xf32>
    %221 = arith.addf %220, %20 : vector<8x128xf32>
    %222 = vector.extract_strided_slice %221 {offsets = [0, 0], sizes = [8, 32], strides = [1, 1]} : vector<8x128xf32> to vector<8x32xf32>
    %223 = vector.extract_strided_slice %221 {offsets = [0, 32], sizes = [8, 32], strides = [1, 1]} : vector<8x128xf32> to vector<8x32xf32>
    %224 = vector.extract_strided_slice %221 {offsets = [0, 64], sizes = [8, 32], strides = [1, 1]} : vector<8x128xf32> to vector<8x32xf32>
    %225 = vector.extract_strided_slice %221 {offsets = [0, 96], sizes = [8, 32], strides = [1, 1]} : vector<8x128xf32> to vector<8x32xf32>
    %226 = arith.mulf %223, %196 : vector<8x32xf32>
    %227 = arith.mulf %222, %224 : vector<8x32xf32>
    %228 = arith.addf %226, %227 : vector<8x32xf32>
    %229 = math.tanh %228 : vector<8x32xf32>
    %230 = arith.mulf %225, %229 : vector<8x32xf32>
    %cst_33 = arith.constant dense<0.000000e+00> : vector<8x128xf32>
    %231 = tpu.matmul %230, %3, %cst_33 {dimension_numbers = #tpu.dot_dimension_numbers<[1], [0], [0], [1], [0, 0, 1, 1], [], []>} : vector<8x32xf32>, vector<32x128xf32>, vector<8x128xf32> -> vector<8x128xf32>
    %232 = arith.addf %8, %231 : vector<8x128xf32>
    %cst_34 = arith.constant dense<0.000000e+00> : vector<8x128xf32>
    %233 = tpu.matmul %214, %5, %cst_34 {dimension_numbers = #tpu.dot_dimension_numbers<[1], [0], [0], [1], [0, 0, 1, 1], [], []>} : vector<8x32xf32>, vector<32x128xf32>, vector<8x128xf32> -> vector<8x128xf32>
    %234 = arith.addf %232, %233 : vector<8x128xf32>
    %235 = math.tanh %234 : vector<8x128xf32>
    %236 = arith.mulf %235, %17 : vector<8x128xf32>
    %237 = arith.addf %236, %20 : vector<8x128xf32>
    %238 = vector.extract_strided_slice %237 {offsets = [0, 0], sizes = [8, 32], strides = [1, 1]} : vector<8x128xf32> to vector<8x32xf32>
    %239 = vector.extract_strided_slice %237 {offsets = [0, 32], sizes = [8, 32], strides = [1, 1]} : vector<8x128xf32> to vector<8x32xf32>
    %240 = vector.extract_strided_slice %237 {offsets = [0, 64], sizes = [8, 32], strides = [1, 1]} : vector<8x128xf32> to vector<8x32xf32>
    %241 = vector.extract_strided_slice %237 {offsets = [0, 96], sizes = [8, 32], strides = [1, 1]} : vector<8x128xf32> to vector<8x32xf32>
    %242 = arith.mulf %239, %212 : vector<8x32xf32>
    %243 = arith.mulf %238, %240 : vector<8x32xf32>
    %244 = arith.addf %242, %243 : vector<8x32xf32>
    %245 = math.tanh %244 : vector<8x32xf32>
    %246 = arith.mulf %241, %245 : vector<8x32xf32>
    %247 = vector.extract_strided_slice %21 {offsets = [7, 0, 0], sizes = [1, 8, 128], strides = [1, 1, 1]} : vector<8x8x128xf32> to vector<1x8x128xf32>
    %248 = vector.shape_cast %247 : vector<1x8x128xf32> to vector<8x128xf32>
    %cst_35 = arith.constant dense<0.000000e+00> : vector<8x128xf32>
    %249 = tpu.matmul %230, %1, %cst_35 {dimension_numbers = #tpu.dot_dimension_numbers<[1], [0], [0], [1], [0, 0, 1, 1], [], []>} : vector<8x32xf32>, vector<32x128xf32>, vector<8x128xf32> -> vector<8x128xf32>
    %250 = arith.addf %248, %249 : vector<8x128xf32>
    %251 = math.tanh %250 : vector<8x128xf32>
    %252 = arith.mulf %251, %17 : vector<8x128xf32>
    %253 = arith.addf %252, %20 : vector<8x128xf32>
    %254 = vector.extract_strided_slice %253 {offsets = [0, 0], sizes = [8, 32], strides = [1, 1]} : vector<8x128xf32> to vector<8x32xf32>
    %255 = vector.extract_strided_slice %253 {offsets = [0, 32], sizes = [8, 32], strides = [1, 1]} : vector<8x128xf32> to vector<8x32xf32>
    %256 = vector.extract_strided_slice %253 {offsets = [0, 64], sizes = [8, 32], strides = [1, 1]} : vector<8x128xf32> to vector<8x32xf32>
    %257 = vector.extract_strided_slice %253 {offsets = [0, 96], sizes = [8, 32], strides = [1, 1]} : vector<8x128xf32> to vector<8x32xf32>
    %258 = arith.mulf %255, %228 : vector<8x32xf32>
    %259 = arith.mulf %254, %256 : vector<8x32xf32>
    %260 = arith.addf %258, %259 : vector<8x32xf32>
    %261 = math.tanh %260 : vector<8x32xf32>
    %262 = arith.mulf %257, %261 : vector<8x32xf32>
    %cst_36 = arith.constant dense<0.000000e+00> : vector<8x128xf32>
    %263 = tpu.matmul %262, %3, %cst_36 {dimension_numbers = #tpu.dot_dimension_numbers<[1], [0], [0], [1], [0, 0, 1, 1], [], []>} : vector<8x32xf32>, vector<32x128xf32>, vector<8x128xf32> -> vector<8x128xf32>
    %264 = arith.addf %8, %263 : vector<8x128xf32>
    %cst_37 = arith.constant dense<0.000000e+00> : vector<8x128xf32>
    %265 = tpu.matmul %246, %5, %cst_37 {dimension_numbers = #tpu.dot_dimension_numbers<[1], [0], [0], [1], [0, 0, 1, 1], [], []>} : vector<8x32xf32>, vector<32x128xf32>, vector<8x128xf32> -> vector<8x128xf32>
    %266 = arith.addf %264, %265 : vector<8x128xf32>
    %267 = math.tanh %266 : vector<8x128xf32>
    %268 = arith.mulf %267, %17 : vector<8x128xf32>
    %269 = arith.addf %268, %20 : vector<8x128xf32>
    %270 = vector.extract_strided_slice %269 {offsets = [0, 0], sizes = [8, 32], strides = [1, 1]} : vector<8x128xf32> to vector<8x32xf32>
    %271 = vector.extract_strided_slice %269 {offsets = [0, 32], sizes = [8, 32], strides = [1, 1]} : vector<8x128xf32> to vector<8x32xf32>
    %272 = vector.extract_strided_slice %269 {offsets = [0, 64], sizes = [8, 32], strides = [1, 1]} : vector<8x128xf32> to vector<8x32xf32>
    %273 = vector.extract_strided_slice %269 {offsets = [0, 96], sizes = [8, 32], strides = [1, 1]} : vector<8x128xf32> to vector<8x32xf32>
    %274 = arith.mulf %271, %244 : vector<8x32xf32>
    %275 = arith.mulf %270, %272 : vector<8x32xf32>
    %276 = arith.addf %274, %275 : vector<8x32xf32>
    %277 = math.tanh %276 : vector<8x32xf32>
    %278 = arith.mulf %273, %277 : vector<8x32xf32>
    %c0_38 = arith.constant 0 : index
    %c0_39 = arith.constant 0 : index
    %279 = vector.load %arg6[%c0_38, %c0_39] : memref<1x32xf32, #tpu.memory_space<vmem>>, vector<1x32xf32>
    %280 = vector.broadcast %279 : vector<1x32xf32> to vector<8x32xf32>
    %281 = arith.mulf %278, %280 : vector<8x32xf32>
    %cst_40 = arith.constant dense<0.000000e+00> : vector<8xf32>
    %282 = vector.multi_reduction <add>, %281, %cst_40 [1] : vector<8x32xf32> to vector<8xf32>
    %283 = vector.shape_cast %282 : vector<8xf32> to vector<8x1xf32>
    %c0_41 = arith.constant 0 : index
    %c0_42 = arith.constant 0 : index
    %284 = vector.load %arg7[%c0_41, %c0_42] : memref<1x1xf32, #tpu.memory_space<vmem>>, vector<1x1xf32>
    %285 = vector.broadcast %284 : vector<1x1xf32> to vector<8x1xf32>
    %286 = arith.addf %283, %285 : vector<8x1xf32>
    %c0_43 = arith.constant 0 : index
    %c0_44 = arith.constant 0 : index
    %287 = vector.load %arg8[%c0_43, %c0_44] : memref<8x1xf32, #tpu.memory_space<vmem>>, vector<8x1xf32>
    tpu.vector_store %arg8[%c0_43, %c0_44], %286 {strides = array<i32>} : memref<8x1xf32, #tpu.memory_space<vmem>>, vector<8x1xf32>,
    return
  }
  func.func @transform_0(%arg0: i32) -> (i32, i32, i32) {
    %c0_i32 = arith.constant 0 : i32
    %c0_i32_0 = arith.constant 0 : i32
    %c0_i32_1 = arith.constant 0 : i32
    return %c0_i32, %arg0, %c0_i32_0 : i32, i32, i32
  }
  func.func @transform_1(%arg0: i32) -> (i32, i32) {
    %c0_i32 = arith.constant 0 : i32
    %c0_i32_0 = arith.constant 0 : i32
    %c0_i32_1 = arith.constant 0 : i32
    return %c0_i32, %c0_i32_0 : i32, i32
  }
  func.func @transform_2(%arg0: i32) -> (i32, i32) {
    %c0_i32 = arith.constant 0 : i32
    %c0_i32_0 = arith.constant 0 : i32
    %c0_i32_1 = arith.constant 0 : i32
    return %c0_i32, %c0_i32_0 : i32, i32
  }
  func.func @transform_3(%arg0: i32) -> (i32, i32) {
    %c0_i32 = arith.constant 0 : i32
    %c0_i32_0 = arith.constant 0 : i32
    %c0_i32_1 = arith.constant 0 : i32
    return %c0_i32, %c0_i32_0 : i32, i32
  }
  func.func @transform_4(%arg0: i32) -> (i32, i32) {
    %c0_i32 = arith.constant 0 : i32
    %c0_i32_0 = arith.constant 0 : i32
    %c0_i32_1 = arith.constant 0 : i32
    return %c0_i32, %c0_i32_0 : i32, i32
  }
  func.func @transform_5(%arg0: i32) -> (i32, i32) {
    %c0_i32 = arith.constant 0 : i32
    %c0_i32_0 = arith.constant 0 : i32
    %c0_i32_1 = arith.constant 0 : i32
    return %c0_i32, %c0_i32_0 : i32, i32
  }
  func.func @transform_6(%arg0: i32) -> (i32, i32) {
    %c0_i32 = arith.constant 0 : i32
    %c0_i32_0 = arith.constant 0 : i32
    %c0_i32_1 = arith.constant 0 : i32
    return %c0_i32, %c0_i32_0 : i32, i32
  }
  func.func @transform_7(%arg0: i32) -> (i32, i32) {
    %c0_i32 = arith.constant 0 : i32
    %c0_i32_0 = arith.constant 0 : i32
    return %arg0, %c0_i32 : i32, i32
  }
}

</mosaic_0001>

<llo_original>
// kernel: tpu_custom_call.1
$region0: #{tpu_custom_call.1}
  #allocation0 [shape = 'u32[]', space=smem, size = 0x4, offset = 0x4, fixed_abs, tag = 'smem constant byte address 0x4 - core index']
  #allocation1 [shape = 'u32[72,128]{1,0:T(1,128)}', space=vmem, size = 0x9000, scoped, tag = 'internal scratch']
  #allocation2 [shape = 'f32[1,1]{1,0:T(1,128)S(1)}', space=vmem, size = 0x200, scoped, tag = 'scoped memory for tpu_custom_call.1']
  %s0 = inlined_call_operand.hbm [shape: f32[8,8,128], index: 0, kind: input, shape index: {}]
  %s1 = inlined_call_operand.hbm [shape: bf16[32,128], index: 1, kind: input, shape index: {}]
  %s2 = inlined_call_operand.hbm [shape: bf16[32,128], index: 2, kind: input, shape index: {}]
  %s3 = inlined_call_operand.hbm [shape: bf16[32,128], index: 3, kind: input, shape index: {}]
  %s4 = inlined_call_operand.vmem [shape: f32[1,128], index: 4, kind: input, shape index: {}]
  %s5 = inlined_call_operand.vmem [shape: f32[1,32], index: 5, kind: input, shape index: {}]
  %s6 = inlined_call_operand.<no memory space> [shape: f32[1,1], index: 6, kind: input, shape index: {}]
  %s7 = inlined_call_operand.vmem [shape: f32[8,1], index: 7, kind: output, shape index: {}]
  %s8 = sld [smem:[#allocation0]]
  $region54: #{tpu_custom_call.1} parent=0
    _
  %s10 = ssub.s32 1, %s8
  %s11 = scalar_select 0, %s10, %s8
  %v12 = vstv %s6
  %13 = vst [vmem:[#allocation2] sm:$0x1] %v12
  $region1: #{tpu_custom_call.1} parent=0
    #allocation3 [shape = 'u8[32768]{0}', space=vmem, size = 0x8000, scoped, tag = 'input window, operand 0, single buffered']
    #allocation4 [shape = 's32[1]{0}', space=sflag, size = 0x4, scoped, tag = 'scoped memory for tpu_custom_call.1']
    #allocation5 [shape = 'u8[8192]{0}', space=vmem, size = 0x2000, scoped, tag = 'input window, operand 1, single buffered']
    #allocation6 [shape = 's32[1]{0}', space=sflag, size = 0x4, scoped, tag = 'scoped memory for tpu_custom_call.1']
    #allocation7 [shape = 'u8[8192]{0}', space=vmem, size = 0x2000, scoped, tag = 'input window, operand 2, single buffered']
    #allocation8 [shape = 'u8[8192]{0}', space=vmem, size = 0x2000, scoped, tag = 'input window, operand 3, single buffered']
    #allocation9 [shape = 's32[1]{0}', space=sflag, size = 0x4, scoped, tag = 'scoped memory for tpu_custom_call.1']
    %14 = vsyncpa [#allocation4], 0
    %15 = vsyncpa [#allocation6], 0
    %16 = vsyncpa [#allocation9], 0
    // Predicated region
    $region2: #{tpu_custom_call.1} parent=1 // pred_check
      _
    $region3: #{tpu_custom_call.1} parent=1 // pred_check_branch
      %18 = sbr.rel (0) target = $region5
    $region4: #{tpu_custom_call.1} parent=1 // pred_region
      %20 = vsyncadd [#allocation4], 0
      %s21 = sshll.u32 %s0, 4
      %s22 = int_to_ptr.hbm [resolvable:$true] %s21
      %s23 = sshll.u32 [#allocation3], 4
      %s24 = int_to_ptr.vmem [resolvable:$true] %s23
      %29 = dma.hbm_to_vmem [thread:$0]  %s22, 1024, %s24, [#allocation4], 128, 128, 8
    $region5: #{tpu_custom_call.1} parent=1 // pred_fallthru
      _
    // Predicated region
    $region6: #{tpu_custom_call.1} parent=1 // pred_check
      _
    $region7: #{tpu_custom_call.1} parent=1 // pred_check_branch
      %31 = sbr.rel (0) target = $region9
    $region8: #{tpu_custom_call.1} parent=1 // pred_region
      %33 = vsyncadd [#allocation6], 0
      %s34 = sshll.u32 %s1, 4
      %s35 = int_to_ptr.hbm [resolvable:$true] %s34
      %s36 = sshll.u32 [#allocation5], 4
      %s37 = int_to_ptr.vmem [resolvable:$true] %s36
      %42 = dma.hbm_to_vmem [thread:$0]  %s35, 256, %s37, [#allocation6], 64, 64, 4
    $region9: #{tpu_custom_call.1} parent=1 // pred_fallthru
      _
    // Predicated region
    $region10: #{tpu_custom_call.1} parent=1 // pred_check
      _
    $region11: #{tpu_custom_call.1} parent=1 // pred_check_branch
      %44 = sbr.rel (0) target = $region13
    $region12: #{tpu_custom_call.1} parent=1 // pred_region
      %46 = vsyncadd [#allocation6], 0
      %s47 = sshll.u32 %s2, 4
      %s48 = int_to_ptr.hbm [resolvable:$true] %s47
      %s49 = sshll.u32 [#allocation7], 4
      %s50 = int_to_ptr.vmem [resolvable:$true] %s49
      %55 = dma.hbm_to_vmem [thread:$0]  %s48, 256, %s50, [#allocation6], 64, 64, 4
    $region13: #{tpu_custom_call.1} parent=1 // pred_fallthru
      _
    // Predicated region
    $region14: #{tpu_custom_call.1} parent=1 // pred_check
      _
    $region15: #{tpu_custom_call.1} parent=1 // pred_check_branch
      %57 = sbr.rel (0) target = $region17
    $region16: #{tpu_custom_call.1} parent=1 // pred_region
      %59 = vsyncadd [#allocation9], 0
      %s60 = sshll.u32 %s3, 4
      %s61 = int_to_ptr.hbm [resolvable:$true] %s60
      %s62 = sshll.u32 [#allocation8], 4
      %s63 = int_to_ptr.vmem [resolvable:$true] %s62
      %68 = dma.hbm_to_vmem [thread:$0]  %s61, 256, %s63, [#allocation9], 64, 64, 4
    $region17: #{tpu_custom_call.1} parent=1 // pred_fallthru
      _
    // Predicated region
    $region18: #{tpu_custom_call.1} parent=1 // pred_check
      _
    $region19: #{tpu_custom_call.1} parent=1 // pred_check_branch
      %70 = sbr.rel (0) target = $region21
    $region20: #{tpu_custom_call.1} parent=1 // pred_region
      _
    $region21: #{tpu_custom_call.1} parent=1 // pred_fallthru
      _
    // Predicated region
    $region22: #{tpu_custom_call.1} parent=1 // pred_check
      _
    $region23: #{tpu_custom_call.1} parent=1 // pred_check_branch
      %72 = sbr.rel (0) target = $region25
    $region24: #{tpu_custom_call.1} parent=1 // pred_region
      _
    $region25: #{tpu_custom_call.1} parent=1 // pred_fallthru
      _
    // Predicated region
    $region26: #{tpu_custom_call.1} parent=1 // pred_check
      _
    $region27: #{tpu_custom_call.1} parent=1 // pred_check_branch
      %74 = sbr.rel (0) target = $region29
    $region28: #{tpu_custom_call.1} parent=1 // pred_region
      _
    $region29: #{tpu_custom_call.1} parent=1 // pred_fallthru
      _
    // Predicated region
    $region30: #{tpu_custom_call.1} parent=1 // pred_check
      _
    $region31: #{tpu_custom_call.1} parent=1 // pred_check_branch
      %76 = sbr.rel (0) target = $region33
    $region32: #{tpu_custom_call.1} parent=1 // pred_region
      %78 = dma.done [#allocation4], 1024
    $region33: #{tpu_custom_call.1} parent=1 // pred_fallthru
      _
    // Predicated region
    $region34: #{tpu_custom_call.1} parent=1 // pred_check
      _
    $region35: #{tpu_custom_call.1} parent=1 // pred_check_branch
      %80 = sbr.rel (0) target = $region37
    $region36: #{tpu_custom_call.1} parent=1 // pred_region
      %82 = dma.done [#allocation6], 256
    $region37: #{tpu_custom_call.1} parent=1 // pred_fallthru
      _
    // Predicated region
    $region38: #{tpu_custom_call.1} parent=1 // pred_check
      _
    $region39: #{tpu_custom_call.1} parent=1 // pred_check_branch
      %84 = sbr.rel (0) target = $region41
    $region40: #{tpu_custom_call.1} parent=1 // pred_region
      %86 = dma.done [#allocation6], 256
    $region41: #{tpu_custom_call.1} parent=1 // pred_fallthru
      _
    // Predicated region
    $region42: #{tpu_custom_call.1} parent=1 // pred_check
      _
    $region43: #{tpu_custom_call.1} parent=1 // pred_check_branch
      %88 = sbr.rel (0) target = $region45
    $region44: #{tpu_custom_call.1} parent=1 // pred_region
      %90 = dma.done [#allocation9], 256
    $region45: #{tpu_custom_call.1} parent=1 // pred_fallthru
      _
    %v91 = vld [vmem:[#allocation5] sm:$0xf]
    %v92 = vld [vmem:[#allocation5 + $0x4] sm:$0xf]
    %v93 = vld [vmem:[#allocation5 + $0x8] sm:$0xf]
    %v94 = vld [vmem:[#allocation5 + $0xc] sm:$0xf]
    %v95 = vunpack.c.l.bf16 %v91
    %v96 = vunpack.c.l.bf16 %v92
    %v97 = vunpack.c.l.bf16 %v93
    %v98 = vunpack.c.l.bf16 %v94
    %v99 = vld [vmem:[#allocation7] sm:$0xf]
    %v100 = vld [vmem:[#allocation7 + $0x4] sm:$0xf]
    %v101 = vld [vmem:[#allocation7 + $0x8] sm:$0xf]
    %v102 = vld [vmem:[#allocation7 + $0xc] sm:$0xf]
    %v103 = vunpack.c.l.bf16 %v99
    %v104 = vunpack.c.l.bf16 %v100
    %v105 = vunpack.c.l.bf16 %v101
    %v106 = vunpack.c.l.bf16 %v102
    %v107 = vld [vmem:[#allocation8] sm:$0xf]
    %v108 = vld [vmem:[#allocation8 + $0x4] sm:$0xf]
    %v109 = vld [vmem:[#allocation8 + $0x8] sm:$0xf]
    %v110 = vld [vmem:[#allocation8 + $0xc] sm:$0xf]
    %v111 = vunpack.c.l.bf16 %v107
    %v112 = vunpack.c.l.bf16 %v108
    %v113 = vunpack.c.l.bf16 %v109
    %v114 = vunpack.c.l.bf16 %v110
    %v115 = vld [vmem:[%s4] sm:$0x1]
    %v117 = vperm.slane %v115, 0
    %v119 = vlaneseq
    %v120 = vand.u32 %v119, 127
    %vm121 = vcmp.ge.s32.totalorder %v120, 64
    %vm122 = vcmp.lt.s32.totalorder %v120, 96
    %vm123 = vmand %vm121, %vm122
    %v124 = vsel %vm123, 1.0, 0.5
    %v125 = vsel %vm123, 0.0, 0.5
    %v126 = vld [vmem:[#allocation3] sm:$0xff]
    %v127 = vld [vmem:[#allocation3 + $0x8] sm:$0xff]
    %v128 = vld [vmem:[#allocation3 + $0x10] sm:$0xff]
    %v129 = vld [vmem:[#allocation3 + $0x18] sm:$0xff]
    %v130 = vld [vmem:[#allocation3 + $0x20] sm:$0xff]
    %v131 = vld [vmem:[#allocation3 + $0x28] sm:$0xff]
    %v132 = vld [vmem:[#allocation3 + $0x30] sm:$0xff]
    %v133 = vld [vmem:[#allocation3 + $0x38] sm:$0xff]
    %vm134 = vcmask 261120
    %v136 = vsel %vm134, 0.0, 0
    %138 = vmatpush.msra.mxu0 0.0
    %139 = vmatpush.msra.mxu0 0.0
    %140 = vmatpush.msra.mxu0 0.0
    %141 = vmatpush.msra.mxu0 0.0
    %142 = vmatpush.msra.mxu0 0.0
    %143 = vmatpush.msra.mxu0 0.0
    %144 = vmatpush.msra.mxu0 0.0
    %145 = vmatpush.msra.mxu0 0.0
    %146 = vmatpush.msra.mxu0 0.0
    %147 = vmatpush.msra.mxu0 0.0
    %148 = vmatpush.msra.mxu0 0.0
    %149 = vmatpush.msra.mxu0 0.0
    %150 = vmatpush.msra.mxu0 %v98
    %151 = vmatpush.msra.mxu0 %v97
    %152 = vmatpush.msra.mxu0 %v96
    %153 = vmatpush.msra.mxu0 %v95
    %154 = vmatmul.f32.gmra.mxu0 %v136
    %v155 = vpop.f32.mrf.mxu0
    %v156 = vadd.f32 0.0, %v155
    %157 = vdwg.mxu0
    %v158 = vadd.f32 %v126, %v156
    %v159 = vtanh.pop %v158
    %v160 = vmul.f32 %v159, %v124
    %v161 = vadd.f32 %v160, %v125
    %v162 = vmul.f32 %v161, 0.0
    %164 = vrot.lane.b32.xlu0 %v161, 64
    %v165 = vpop.permute.xlu0 %164
    %v167 = vmul.f32 %v161, %v165
    %169 = vrot.lane.b32.xlu0 %v167, 32
    %v170 = vpop.permute.xlu0 %169
    %v172 = vadd.f32 %v162, %v170
    %v173 = vtanh.pop %v172
    %175 = vrot.lane.b32.xlu0 %v173, 64
    %v176 = vpop.permute.xlu0 %175
    %v178 = vmul.f32 %v161, %v176
    %180 = vrot.lane.b32.xlu0 %v178, 32
    %v181 = vpop.permute.xlu0 %180
    %v182 = vsel %vm134, %v181, 0
    %184 = vmatpush.msra.mxu0 0.0
    %185 = vmatpush.msra.mxu0 0.0
    %186 = vmatpush.msra.mxu0 0.0
    %187 = vmatpush.msra.mxu0 0.0
    %188 = vmatpush.msra.mxu0 0.0
    %189 = vmatpush.msra.mxu0 0.0
    %190 = vmatpush.msra.mxu0 0.0
    %191 = vmatpush.msra.mxu0 0.0
    %192 = vmatpush.msra.mxu0 0.0
    %193 = vmatpush.msra.mxu0 0.0
    %194 = vmatpush.msra.mxu0 0.0
    %195 = vmatpush.msra.mxu0 0.0
    %196 = vmatpush.msra.mxu0 %v106
    %197 = vmatpush.msra.mxu0 %v105
    %198 = vmatpush.msra.mxu0 %v104
    %199 = vmatpush.msra.mxu0 %v103
    %200 = vmatmul.f32.gmra.mxu0 %v182
    %v201 = vpop.f32.mrf.mxu0
    %v202 = vadd.f32 0.0, %v201
    %203 = vdwg.mxu0
    %v204 = vadd.f32 %v117, %v202
    %205 = vmatpush.msra.mxu0 0.0
    %206 = vmatpush.msra.mxu0 0.0
    %207 = vmatpush.msra.mxu0 0.0
    %208 = vmatpush.msra.mxu0 0.0
    %209 = vmatpush.msra.mxu0 0.0
    %210 = vmatpush.msra.mxu0 0.0
    %211 = vmatpush.msra.mxu0 0.0
    %212 = vmatpush.msra.mxu0 0.0
    %213 = vmatpush.msra.mxu0 0.0
    %214 = vmatpush.msra.mxu0 0.0
    %215 = vmatpush.msra.mxu0 0.0
    %216 = vmatpush.msra.mxu0 0.0
    %217 = vmatpush.msra.mxu0 %v114
    %218 = vmatpush.msra.mxu0 %v113
    %219 = vmatpush.msra.mxu0 %v112
    %220 = vmatpush.msra.mxu0 %v111
    %221 = vmatmul.f32.gmra.mxu0 %v136
    %v222 = vpop.f32.mrf.mxu0
    %v223 = vadd.f32 0.0, %v222
    %224 = vdwg.mxu0
    %v225 = vadd.f32 %v204, %v223
    %v226 = vtanh.pop %v225
    %v227 = vmul.f32 %v226, %v124
    %v228 = vadd.f32 %v227, %v125
    %v229 = vmul.f32 %v228, 0.0
    %231 = vrot.lane.b32.xlu0 %v228, 64
    %v232 = vpop.permute.xlu0 %231
    %v234 = vmul.f32 %v228, %v232
    %236 = vrot.lane.b32.xlu0 %v234, 32
    %v237 = vpop.permute.xlu0 %236
    %v239 = vadd.f32 %v229, %v237
    %v240 = vtanh.pop %v239
    %242 = vrot.lane.b32.xlu0 %v240, 64
    %v243 = vpop.permute.xlu0 %242
    %v245 = vmul.f32 %v228, %v243
    %246 = vmatpush.msra.mxu0 0.0
    %247 = vmatpush.msra.mxu0 0.0
    %248 = vmatpush.msra.mxu0 0.0
    %249 = vmatpush.msra.mxu0 0.0
    %250 = vmatpush.msra.mxu0 0.0
    %251 = vmatpush.msra.mxu0 0.0
    %252 = vmatpush.msra.mxu0 0.0
    %253 = vmatpush.msra.mxu0 0.0
    %254 = vmatpush.msra.mxu0 0.0
    %255 = vmatpush.msra.mxu0 0.0
    %256 = vmatpush.msra.mxu0 0.0
    %257 = vmatpush.msra.mxu0 0.0
    %258 = vmatpush.msra.mxu0 %v98
    %259 = vmatpush.msra.mxu0 %v97
    %260 = vmatpush.msra.mxu0 %v96
    %261 = vmatpush.msra.mxu0 %v95
    %262 = vmatmul.f32.gmra.mxu0 %v182
    %v263 = vpop.f32.mrf.mxu0
    %v264 = vadd.f32 0.0, %v263
    %265 = vdwg.mxu0
    %v266 = vadd.f32 %v127, %v264
    %v267 = vtanh.pop %v266
    %v268 = vmul.f32 %v267, %v124
    %v269 = vadd.f32 %v268, %v125
    %v270 = vmul.f32 %v269, %v172
    %272 = vrot.lane.b32.xlu0 %v269, 64
    %v273 = vpop.permute.xlu0 %272
    %v275 = vmul.f32 %v269, %v273
    %277 = vrot.lane.b32.xlu0 %v275, 32
    %v278 = vpop.permute.xlu0 %277
    %v280 = vadd.f32 %v270, %v278
    %v281 = vtanh.pop %v280
    %283 = vrot.lane.b32.xlu0 %v281, 64
    %v284 = vpop.permute.xlu0 %283
    %v286 = vmul.f32 %v269, %v284
    %288 = vrot.lane.b32.xlu0 %v286, 32
    %v289 = vpop.permute.xlu0 %288
    %v290 = vsel %vm134, %v289, 0
    %292 = vmatpush.msra.mxu0 0.0
    %293 = vmatpush.msra.mxu0 0.0
    %294 = vmatpush.msra.mxu0 0.0
    %295 = vmatpush.msra.mxu0 0.0
    %296 = vmatpush.msra.mxu0 0.0
    %297 = vmatpush.msra.mxu0 0.0
    %298 = vmatpush.msra.mxu0 0.0
    %299 = vmatpush.msra.mxu0 0.0
    %300 = vmatpush.msra.mxu0 0.0
    %301 = vmatpush.msra.mxu0 0.0
    %302 = vmatpush.msra.mxu0 0.0
    %303 = vmatpush.msra.mxu0 0.0
    %304 = vmatpush.msra.mxu0 %v106
    %305 = vmatpush.msra.mxu0 %v105
    %306 = vmatpush.msra.mxu0 %v104
    %307 = vmatpush.msra.mxu0 %v103
    %308 = vmatmul.f32.gmra.mxu0 %v290
    %v309 = vpop.f32.mrf.mxu0
    %v310 = vadd.f32 0.0, %v309
    %311 = vdwg.mxu0
    %v312 = vadd.f32 %v117, %v310
    %314 = vrot.lane.b32.xlu0 %v245, 32
    %v315 = vpop.permute.xlu0 %314
    %v316 = vsel %vm134, %v315, 0
    %318 = vmatpush.msra.mxu0 0.0
    %319 = vmatpush.msra.mxu0 0.0
    %320 = vmatpush.msra.mxu0 0.0
    %321 = vmatpush.msra.mxu0 0.0
    %322 = vmatpush.msra.mxu0 0.0
    %323 = vmatpush.msra.mxu0 0.0
    %324 = vmatpush.msra.mxu0 0.0
    %325 = vmatpush.msra.mxu0 0.0
    %326 = vmatpush.msra.mxu0 0.0
    %327 = vmatpush.msra.mxu0 0.0
    %328 = vmatpush.msra.mxu0 0.0
    %329 = vmatpush.msra.mxu0 0.0
    %330 = vmatpush.msra.mxu0 %v114
    %331 = vmatpush.msra.mxu0 %v113
    %332 = vmatpush.msra.mxu0 %v112
    %333 = vmatpush.msra.mxu0 %v111
    %334 = vmatmul.f32.gmra.mxu0 %v316
    %v335 = vpop.f32.mrf.mxu0
    %v336 = vadd.f32 0.0, %v335
    %337 = vdwg.mxu0
    %v338 = vadd.f32 %v312, %v336
    %v339 = vtanh.pop %v338
    %v340 = vmul.f32 %v339, %v124
    %v341 = vadd.f32 %v340, %v125
    %v342 = vmul.f32 %v341, %v239
    %344 = vrot.lane.b32.xlu0 %v341, 64
    %v345 = vpop.permute.xlu0 %344
    %v347 = vmul.f32 %v341, %v345
    %349 = vrot.lane.b32.xlu0 %v347, 32
    %v350 = vpop.permute.xlu0 %349
    %v352 = vadd.f32 %v342, %v350
    %v353 = vtanh.pop %v352
    %355 = vrot.lane.b32.xlu0 %v353, 64
    %v356 = vpop.permute.xlu0 %355
    %v358 = vmul.f32 %v341, %v356
    %359 = vmatpush.msra.mxu0 0.0
    %360 = vmatpush.msra.mxu0 0.0
    %361 = vmatpush.msra.mxu0 0.0
    %362 = vmatpush.msra.mxu0 0.0
    %363 = vmatpush.msra.mxu0 0.0
    %364 = vmatpush.msra.mxu0 0.0
    %365 = vmatpush.msra.mxu0 0.0
    %366 = vmatpush.msra.mxu0 0.0
    %367 = vmatpush.msra.mxu0 0.0
    %368 = vmatpush.msra.mxu0 0.0
    %369 = vmatpush.msra.mxu0 0.0
    %370 = vmatpush.msra.mxu0 0.0
    %371 = vmatpush.msra.mxu0 %v98
    %372 = vmatpush.msra.mxu0 %v97
    %373 = vmatpush.msra.mxu0 %v96
    %374 = vmatpush.msra.mxu0 %v95
    %375 = vmatmul.f32.gmra.mxu0 %v290
    %v376 = vpop.f32.mrf.mxu0
    %v377 = vadd.f32 0.0, %v376
    %378 = vdwg.mxu0
    %v379 = vadd.f32 %v128, %v377
    %v380 = vtanh.pop %v379
    %v381 = vmul.f32 %v380, %v124
    %v382 = vadd.f32 %v381, %v125
    %v383 = vmul.f32 %v382, %v280
    %385 = vrot.lane.b32.xlu0 %v382, 64
    %v386 = vpop.permute.xlu0 %385
    %v388 = vmul.f32 %v382, %v386
    %390 = vrot.lane.b32.xlu0 %v388, 32
    %v391 = vpop.permute.xlu0 %390
    %v393 = vadd.f32 %v383, %v391
    %v394 = vtanh.pop %v393
    %396 = vrot.lane.b32.xlu0 %v394, 64
    %v397 = vpop.permute.xlu0 %396
    %v399 = vmul.f32 %v382, %v397
    %401 = vrot.lane.b32.xlu0 %v399, 32
    %v402 = vpop.permute.xlu0 %401
    %v403 = vsel %vm134, %v402, 0
    %405 = vmatpush.msra.mxu0 0.0
    %406 = vmatpush.msra.mxu0 0.0
    %407 = vmatpush.msra.mxu0 0.0
    %408 = vmatpush.msra.mxu0 0.0
    %409 = vmatpush.msra.mxu0 0.0
    %410 = vmatpush.msra.mxu0 0.0
    %411 = vmatpush.msra.mxu0 0.0
    %412 = vmatpush.msra.mxu0 0.0
    %413 = vmatpush.msra.mxu0 0.0
    %414 = vmatpush.msra.mxu0 0.0
    %415 = vmatpush.msra.mxu0 0.0
    %416 = vmatpush.msra.mxu0 0.0
    %417 = vmatpush.msra.mxu0 %v106
    %418 = vmatpush.msra.mxu0 %v105
    %419 = vmatpush.msra.mxu0 %v104
    %420 = vmatpush.msra.mxu0 %v103
    %421 = vmatmul.f32.gmra.mxu0 %v403
    %v422 = vpop.f32.mrf.mxu0
    %v423 = vadd.f32 0.0, %v422
    %424 = vdwg.mxu0
    %v425 = vadd.f32 %v117, %v423
    %427 = vrot.lane.b32.xlu0 %v358, 32
    %v428 = vpop.permute.xlu0 %427
    %v429 = vsel %vm134, %v428, 0
    %431 = vmatpush.msra.mxu0 0.0
    %432 = vmatpush.msra.mxu0 0.0
    %433 = vmatpush.msra.mxu0 0.0
    %434 = vmatpush.msra.mxu0 0.0
    %435 = vmatpush.msra.mxu0 0.0
    %436 = vmatpush.msra.mxu0 0.0
    %437 = vmatpush.msra.mxu0 0.0
    %438 = vmatpush.msra.mxu0 0.0
    %439 = vmatpush.msra.mxu0 0.0
    %440 = vmatpush.msra.mxu0 0.0
    %441 = vmatpush.msra.mxu0 0.0
    %442 = vmatpush.msra.mxu0 0.0
    %443 = vmatpush.msra.mxu0 %v114
    %444 = vmatpush.msra.mxu0 %v113
    %445 = vmatpush.msra.mxu0 %v112
    %446 = vmatpush.msra.mxu0 %v111
    %447 = vmatmul.f32.gmra.mxu0 %v429
    %v448 = vpop.f32.mrf.mxu0
    %v449 = vadd.f32 0.0, %v448
    %450 = vdwg.mxu0
    %v451 = vadd.f32 %v425, %v449
    %v452 = vtanh.pop %v451
    %v453 = vmul.f32 %v452, %v124
    %v454 = vadd.f32 %v453, %v125
    %v455 = vmul.f32 %v454, %v352
    %457 = vrot.lane.b32.xlu0 %v454, 64
    %v458 = vpop.permute.xlu0 %457
    %v460 = vmul.f32 %v454, %v458
    %462 = vrot.lane.b32.xlu0 %v460, 32
    %v463 = vpop.permute.xlu0 %462
    %v465 = vadd.f32 %v455, %v463
    %v466 = vtanh.pop %v465
    %468 = vrot.lane.b32.xlu0 %v466, 64
    %v469 = vpop.permute.xlu0 %468
    %v471 = vmul.f32 %v454, %v469
    %472 = vmatpush.msra.mxu0 0.0
    %473 = vmatpush.msra.mxu0 0.0
    %474 = vmatpush.msra.mxu0 0.0
    %475 = vmatpush.msra.mxu0 0.0
    %476 = vmatpush.msra.mxu0 0.0
    %477 = vmatpush.msra.mxu0 0.0
    %478 = vmatpush.msra.mxu0 0.0
    %479 = vmatpush.msra.mxu0 0.0
    %480 = vmatpush.msra.mxu0 0.0
    %481 = vmatpush.msra.mxu0 0.0
    %482 = vmatpush.msra.mxu0 0.0
    %483 = vmatpush.msra.mxu0 0.0
    %484 = vmatpush.msra.mxu0 %v98
    %485 = vmatpush.msra.mxu0 %v97
    %486 = vmatpush.msra.mxu0 %v96
    %487 = vmatpush.msra.mxu0 %v95
    %488 = vmatmul.f32.gmra.mxu0 %v403
    %v489 = vpop.f32.mrf.mxu0
    %v490 = vadd.f32 0.0, %v489
    %491 = vdwg.mxu0
    %v492 = vadd.f32 %v129, %v490
    %v493 = vtanh.pop %v492
    %v494 = vmul.f32 %v493, %v124
    %v495 = vadd.f32 %v494, %v125
    %v496 = vmul.f32 %v495, %v393
    %498 = vrot.lane.b32.xlu0 %v495, 64
    %v499 = vpop.permute.xlu0 %498
    %v501 = vmul.f32 %v495, %v499
    %503 = vrot.lane.b32.xlu0 %v501, 32
    %v504 = vpop.permute.xlu0 %503
    %v506 = vadd.f32 %v496, %v504
    %v507 = vtanh.pop %v506
    %509 = vrot.lane.b32.xlu0 %v507, 64
    %v510 = vpop.permute.xlu0 %509
    %v512 = vmul.f32 %v495, %v510
    %514 = vrot.lane.b32.xlu0 %v512, 32
    %v515 = vpop.permute.xlu0 %514
    %v516 = vsel %vm134, %v515, 0
    %518 = vmatpush.msra.mxu0 0.0
    %519 = vmatpush.msra.mxu0 0.0
    %520 = vmatpush.msra.mxu0 0.0
    %521 = vmatpush.msra.mxu0 0.0
    %522 = vmatpush.msra.mxu0 0.0
    %523 = vmatpush.msra.mxu0 0.0
    %524 = vmatpush.msra.mxu0 0.0
    %525 = vmatpush.msra.mxu0 0.0
    %526 = vmatpush.msra.mxu0 0.0
    %527 = vmatpush.msra.mxu0 0.0
    %528 = vmatpush.msra.mxu0 0.0
    %529 = vmatpush.msra.mxu0 0.0
    %530 = vmatpush.msra.mxu0 %v106
    %531 = vmatpush.msra.mxu0 %v105
    %532 = vmatpush.msra.mxu0 %v104
    %533 = vmatpush.msra.mxu0 %v103
    %534 = vmatmul.f32.gmra.mxu0 %v516
    %v535 = vpop.f32.mrf.mxu0
    %v536 = vadd.f32 0.0, %v535
    %537 = vdwg.mxu0
    %v538 = vadd.f32 %v117, %v536
    %540 = vrot.lane.b32.xlu0 %v471, 32
    %v541 = vpop.permute.xlu0 %540
    %v542 = vsel %vm134, %v541, 0
    %544 = vmatpush.msra.mxu0 0.0
    %545 = vmatpush.msra.mxu0 0.0
    %546 = vmatpush.msra.mxu0 0.0
    %547 = vmatpush.msra.mxu0 0.0
    %548 = vmatpush.msra.mxu0 0.0
    %549 = vmatpush.msra.mxu0 0.0
    %550 = vmatpush.msra.mxu0 0.0
    %551 = vmatpush.msra.mxu0 0.0
    %552 = vmatpush.msra.mxu0 0.0
    %553 = vmatpush.msra.mxu0 0.0
    %554 = vmatpush.msra.mxu0 0.0
    %555 = vmatpush.msra.mxu0 0.0
    %556 = vmatpush.msra.mxu0 %v114
    %557 = vmatpush.msra.mxu0 %v113
    %558 = vmatpush.msra.mxu0 %v112
    %559 = vmatpush.msra.mxu0 %v111
    %560 = vmatmul.f32.gmra.mxu0 %v542
    %v561 = vpop.f32.mrf.mxu0
    %v562 = vadd.f32 0.0, %v561
    %563 = vdwg.mxu0
    %v564 = vadd.f32 %v538, %v562
    %v565 = vtanh.pop %v564
    %v566 = vmul.f32 %v565, %v124
    %v567 = vadd.f32 %v566, %v125
    %v568 = vmul.f32 %v567, %v465
    %570 = vrot.lane.b32.xlu0 %v567, 64
    %v571 = vpop.permute.xlu0 %570
    %v573 = vmul.f32 %v567, %v571
    %575 = vrot.lane.b32.xlu0 %v573, 32
    %v576 = vpop.permute.xlu0 %575
    %v578 = vadd.f32 %v568, %v576
    %v579 = vtanh.pop %v578
    %581 = vrot.lane.b32.xlu0 %v579, 64
    %v582 = vpop.permute.xlu0 %581
    %v584 = vmul.f32 %v567, %v582
    %585 = vmatpush.msra.mxu0 0.0
    %586 = vmatpush.msra.mxu0 0.0
    %587 = vmatpush.msra.mxu0 0.0
    %588 = vmatpush.msra.mxu0 0.0
    %589 = vmatpush.msra.mxu0 0.0
    %590 = vmatpush.msra.mxu0 0.0
    %591 = vmatpush.msra.mxu0 0.0
    %592 = vmatpush.msra.mxu0 0.0
    %593 = vmatpush.msra.mxu0 0.0
    %594 = vmatpush.msra.mxu0 0.0
    %595 = vmatpush.msra.mxu0 0.0
    %596 = vmatpush.msra.mxu0 0.0
    %597 = vmatpush.msra.mxu0 %v98
    %598 = vmatpush.msra.mxu0 %v97
    %599 = vmatpush.msra.mxu0 %v96
    %600 = vmatpush.msra.mxu0 %v95
    %601 = vmatmul.f32.gmra.mxu0 %v516
    %v602 = vpop.f32.mrf.mxu0
    %v603 = vadd.f32 0.0, %v602
    %604 = vdwg.mxu0
    %v605 = vadd.f32 %v130, %v603
    %v606 = vtanh.pop %v605
    %v607 = vmul.f32 %v606, %v124
    %v608 = vadd.f32 %v607, %v125
    %v609 = vmul.f32 %v608, %v506
    %611 = vrot.lane.b32.xlu0 %v608, 64
    %v612 = vpop.permute.xlu0 %611
    %v614 = vmul.f32 %v608, %v612
    %616 = vrot.lane.b32.xlu0 %v614, 32
    %v617 = vpop.permute.xlu0 %616
    %v619 = vadd.f32 %v609, %v617
    %v620 = vtanh.pop %v619
    %622 = vrot.lane.b32.xlu0 %v620, 64
    %v623 = vpop.permute.xlu0 %622
    %v625 = vmul.f32 %v608, %v623
    %627 = vrot.lane.b32.xlu0 %v625, 32
    %v628 = vpop.permute.xlu0 %627
    %v629 = vsel %vm134, %v628, 0
    %631 = vmatpush.msra.mxu0 0.0
    %632 = vmatpush.msra.mxu0 0.0
    %633 = vmatpush.msra.mxu0 0.0
    %634 = vmatpush.msra.mxu0 0.0
    %635 = vmatpush.msra.mxu0 0.0
    %636 = vmatpush.msra.mxu0 0.0
    %637 = vmatpush.msra.mxu0 0.0
    %638 = vmatpush.msra.mxu0 0.0
    %639 = vmatpush.msra.mxu0 0.0
    %640 = vmatpush.msra.mxu0 0.0
    %641 = vmatpush.msra.mxu0 0.0
    %642 = vmatpush.msra.mxu0 0.0
    %643 = vmatpush.msra.mxu0 %v106
    %644 = vmatpush.msra.mxu0 %v105
    %645 = vmatpush.msra.mxu0 %v104
    %646 = vmatpush.msra.mxu0 %v103
    %647 = vmatmul.f32.gmra.mxu0 %v629
    %v648 = vpop.f32.mrf.mxu0
    %v649 = vadd.f32 0.0, %v648
    %650 = vdwg.mxu0
    %v651 = vadd.f32 %v117, %v649
    %653 = vrot.lane.b32.xlu0 %v584, 32
    %v654 = vpop.permute.xlu0 %653
    %v655 = vsel %vm134, %v654, 0
    %657 = vmatpush.msra.mxu0 0.0
    %658 = vmatpush.msra.mxu0 0.0
    %659 = vmatpush.msra.mxu0 0.0
    %660 = vmatpush.msra.mxu0 0.0
    %661 = vmatpush.msra.mxu0 0.0
    %662 = vmatpush.msra.mxu0 0.0
    %663 = vmatpush.msra.mxu0 0.0
    %664 = vmatpush.msra.mxu0 0.0
    %665 = vmatpush.msra.mxu0 0.0
    %666 = vmatpush.msra.mxu0 0.0
    %667 = vmatpush.msra.mxu0 0.0
    %668 = vmatpush.msra.mxu0 0.0
    %669 = vmatpush.msra.mxu0 %v114
    %670 = vmatpush.msra.mxu0 %v113
    %671 = vmatpush.msra.mxu0 %v112
    %672 = vmatpush.msra.mxu0 %v111
    %673 = vmatmul.f32.gmra.mxu0 %v655
    %v674 = vpop.f32.mrf.mxu0
    %v675 = vadd.f32 0.0, %v674
    %676 = vdwg.mxu0
    %v677 = vadd.f32 %v651, %v675
    %v678 = vtanh.pop %v677
    %v679 = vmul.f32 %v678, %v124
    %v680 = vadd.f32 %v679, %v125
    %v681 = vmul.f32 %v680, %v578
    %683 = vrot.lane.b32.xlu0 %v680, 64
    %v684 = vpop.permute.xlu0 %683
    %v686 = vmul.f32 %v680, %v684
    %688 = vrot.lane.b32.xlu0 %v686, 32
    %v689 = vpop.permute.xlu0 %688
    %v691 = vadd.f32 %v681, %v689
    %v692 = vtanh.pop %v691
    %694 = vrot.lane.b32.xlu0 %v692, 64
    %v695 = vpop.permute.xlu0 %694
    %v697 = vmul.f32 %v680, %v695
    %698 = vmatpush.msra.mxu0 0.0
    %699 = vmatpush.msra.mxu0 0.0
    %700 = vmatpush.msra.mxu0 0.0
    %701 = vmatpush.msra.mxu0 0.0
    %702 = vmatpush.msra.mxu0 0.0
    %703 = vmatpush.msra.mxu0 0.0
    %704 = vmatpush.msra.mxu0 0.0
    %705 = vmatpush.msra.mxu0 0.0
    %706 = vmatpush.msra.mxu0 0.0
    %707 = vmatpush.msra.mxu0 0.0
    %708 = vmatpush.msra.mxu0 0.0
    %709 = vmatpush.msra.mxu0 0.0
    %710 = vmatpush.msra.mxu0 %v98
    %711 = vmatpush.msra.mxu0 %v97
    %712 = vmatpush.msra.mxu0 %v96
    %713 = vmatpush.msra.mxu0 %v95
    %714 = vmatmul.f32.gmra.mxu0 %v629
    %v715 = vpop.f32.mrf.mxu0
    %v716 = vadd.f32 0.0, %v715
    %717 = vdwg.mxu0
    %v718 = vadd.f32 %v131, %v716
    %v719 = vtanh.pop %v718
    %v720 = vmul.f32 %v719, %v124
    %v721 = vadd.f32 %v720, %v125
    %v722 = vmul.f32 %v721, %v619
    %724 = vrot.lane.b32.xlu0 %v721, 64
    %v725 = vpop.permute.xlu0 %724
    %v727 = vmul.f32 %v721, %v725
    %729 = vrot.lane.b32.xlu0 %v727, 32
    %v730 = vpop.permute.xlu0 %729
    %v732 = vadd.f32 %v722, %v730
    %v733 = vtanh.pop %v732
    %735 = vrot.lane.b32.xlu0 %v733, 64
    %v736 = vpop.permute.xlu0 %735
    %v738 = vmul.f32 %v721, %v736
    %740 = vrot.lane.b32.xlu0 %v738, 32
    %v741 = vpop.permute.xlu0 %740
    %v742 = vsel %vm134, %v741, 0
    %744 = vmatpush.msra.mxu0 0.0
    %745 = vmatpush.msra.mxu0 0.0
    %746 = vmatpush.msra.mxu0 0.0
    %747 = vmatpush.msra.mxu0 0.0
    %748 = vmatpush.msra.mxu0 0.0
    %749 = vmatpush.msra.mxu0 0.0
    %750 = vmatpush.msra.mxu0 0.0
    %751 = vmatpush.msra.mxu0 0.0
    %752 = vmatpush.msra.mxu0 0.0
    %753 = vmatpush.msra.mxu0 0.0
    %754 = vmatpush.msra.mxu0 0.0
    %755 = vmatpush.msra.mxu0 0.0
    %756 = vmatpush.msra.mxu0 %v106
    %757 = vmatpush.msra.mxu0 %v105
    %758 = vmatpush.msra.mxu0 %v104
    %759 = vmatpush.msra.mxu0 %v103
    %760 = vmatmul.f32.gmra.mxu0 %v742
    %v761 = vpop.f32.mrf.mxu0
    %v762 = vadd.f32 0.0, %v761
    %763 = vdwg.mxu0
    %v764 = vadd.f32 %v117, %v762
    %766 = vrot.lane.b32.xlu0 %v697, 32
    %v767 = vpop.permute.xlu0 %766
    %v768 = vsel %vm134, %v767, 0
    %770 = vmatpush.msra.mxu0 0.0
    %771 = vmatpush.msra.mxu0 0.0
    %772 = vmatpush.msra.mxu0 0.0
    %773 = vmatpush.msra.mxu0 0.0
    %774 = vmatpush.msra.mxu0 0.0
    %775 = vmatpush.msra.mxu0 0.0
    %776 = vmatpush.msra.mxu0 0.0
    %777 = vmatpush.msra.mxu0 0.0
    %778 = vmatpush.msra.mxu0 0.0
    %779 = vmatpush.msra.mxu0 0.0
    %780 = vmatpush.msra.mxu0 0.0
    %781 = vmatpush.msra.mxu0 0.0
    %782 = vmatpush.msra.mxu0 %v114
    %783 = vmatpush.msra.mxu0 %v113
    %784 = vmatpush.msra.mxu0 %v112
    %785 = vmatpush.msra.mxu0 %v111
    %786 = vmatmul.f32.gmra.mxu0 %v768
    %v787 = vpop.f32.mrf.mxu0
    %v788 = vadd.f32 0.0, %v787
    %789 = vdwg.mxu0
    %v790 = vadd.f32 %v764, %v788
    %v791 = vtanh.pop %v790
    %v792 = vmul.f32 %v791, %v124
    %v793 = vadd.f32 %v792, %v125
    %v794 = vmul.f32 %v793, %v691
    %796 = vrot.lane.b32.xlu0 %v793, 64
    %v797 = vpop.permute.xlu0 %796
    %v799 = vmul.f32 %v793, %v797
    %801 = vrot.lane.b32.xlu0 %v799, 32
    %v802 = vpop.permute.xlu0 %801
    %v804 = vadd.f32 %v794, %v802
    %v805 = vtanh.pop %v804
    %807 = vrot.lane.b32.xlu0 %v805, 64
    %v808 = vpop.permute.xlu0 %807
    %v810 = vmul.f32 %v793, %v808
    %811 = vmatpush.msra.mxu0 0.0
    %812 = vmatpush.msra.mxu0 0.0
    %813 = vmatpush.msra.mxu0 0.0
    %814 = vmatpush.msra.mxu0 0.0
    %815 = vmatpush.msra.mxu0 0.0
    %816 = vmatpush.msra.mxu0 0.0
    %817 = vmatpush.msra.mxu0 0.0
    %818 = vmatpush.msra.mxu0 0.0
    %819 = vmatpush.msra.mxu0 0.0
    %820 = vmatpush.msra.mxu0 0.0
    %821 = vmatpush.msra.mxu0 0.0
    %822 = vmatpush.msra.mxu0 0.0
    %823 = vmatpush.msra.mxu0 %v98
    %824 = vmatpush.msra.mxu0 %v97
    %825 = vmatpush.msra.mxu0 %v96
    %826 = vmatpush.msra.mxu0 %v95
    %827 = vmatmul.f32.gmra.mxu0 %v742
    %v828 = vpop.f32.mrf.mxu0
    %v829 = vadd.f32 0.0, %v828
    %830 = vdwg.mxu0
    %v831 = vadd.f32 %v132, %v829
    %v832 = vtanh.pop %v831
    %v833 = vmul.f32 %v832, %v124
    %v834 = vadd.f32 %v833, %v125
    %v835 = vmul.f32 %v834, %v732
    %837 = vrot.lane.b32.xlu0 %v834, 64
    %v838 = vpop.permute.xlu0 %837
    %v840 = vmul.f32 %v834, %v838
    %842 = vrot.lane.b32.xlu0 %v840, 32
    %v843 = vpop.permute.xlu0 %842
    %v845 = vadd.f32 %v835, %v843
    %v846 = vtanh.pop %v845
    %848 = vrot.lane.b32.xlu0 %v846, 64
    %v849 = vpop.permute.xlu0 %848
    %v851 = vmul.f32 %v834, %v849
    %853 = vrot.lane.b32.xlu0 %v851, 32
    %v854 = vpop.permute.xlu0 %853
    %v855 = vsel %vm134, %v854, 0
    %857 = vmatpush.msra.mxu0 0.0
    %858 = vmatpush.msra.mxu0 0.0
    %859 = vmatpush.msra.mxu0 0.0
    %860 = vmatpush.msra.mxu0 0.0
    %861 = vmatpush.msra.mxu0 0.0
    %862 = vmatpush.msra.mxu0 0.0
    %863 = vmatpush.msra.mxu0 0.0
    %864 = vmatpush.msra.mxu0 0.0
    %865 = vmatpush.msra.mxu0 0.0
    %866 = vmatpush.msra.mxu0 0.0
    %867 = vmatpush.msra.mxu0 0.0
    %868 = vmatpush.msra.mxu0 0.0
    %869 = vmatpush.msra.mxu0 %v106
    %870 = vmatpush.msra.mxu0 %v105
    %871 = vmatpush.msra.mxu0 %v104
    %872 = vmatpush.msra.mxu0 %v103
    %873 = vmatmul.f32.gmra.mxu0 %v855
    %v874 = vpop.f32.mrf.mxu0
    %v875 = vadd.f32 0.0, %v874
    %876 = vdwg.mxu0
    %v877 = vadd.f32 %v117, %v875
    %879 = vrot.lane.b32.xlu0 %v810, 32
    %v880 = vpop.permute.xlu0 %879
    %v881 = vsel %vm134, %v880, 0
    %883 = vmatpush.msra.mxu0 0.0
    %884 = vmatpush.msra.mxu0 0.0
    %885 = vmatpush.msra.mxu0 0.0
    %886 = vmatpush.msra.mxu0 0.0
    %887 = vmatpush.msra.mxu0 0.0
    %888 = vmatpush.msra.mxu0 0.0
    %889 = vmatpush.msra.mxu0 0.0
    %890 = vmatpush.msra.mxu0 0.0
    %891 = vmatpush.msra.mxu0 0.0
    %892 = vmatpush.msra.mxu0 0.0
    %893 = vmatpush.msra.mxu0 0.0
    %894 = vmatpush.msra.mxu0 0.0
    %895 = vmatpush.msra.mxu0 %v114
    %896 = vmatpush.msra.mxu0 %v113
    %897 = vmatpush.msra.mxu0 %v112
    %898 = vmatpush.msra.mxu0 %v111
    %899 = vmatmul.f32.gmra.mxu0 %v881
    %v900 = vpop.f32.mrf.mxu0
    %v901 = vadd.f32 0.0, %v900
    %902 = vdwg.mxu0
    %v903 = vadd.f32 %v877, %v901
    %v904 = vtanh.pop %v903
    %v905 = vmul.f32 %v904, %v124
    %v906 = vadd.f32 %v905, %v125
    %v907 = vmul.f32 %v906, %v804
    %909 = vrot.lane.b32.xlu0 %v906, 64
    %v910 = vpop.permute.xlu0 %909
    %v912 = vmul.f32 %v906, %v910
    %914 = vrot.lane.b32.xlu0 %v912, 32
    %v915 = vpop.permute.xlu0 %914
    %v917 = vadd.f32 %v907, %v915
    %v918 = vtanh.pop %v917
    %920 = vrot.lane.b32.xlu0 %v918, 64
    %v921 = vpop.permute.xlu0 %920
    %v923 = vmul.f32 %v906, %v921
    %924 = vmatpush.msra.mxu0 0.0
    %925 = vmatpush.msra.mxu0 0.0
    %926 = vmatpush.msra.mxu0 0.0
    %927 = vmatpush.msra.mxu0 0.0
    %928 = vmatpush.msra.mxu0 0.0
    %929 = vmatpush.msra.mxu0 0.0
    %930 = vmatpush.msra.mxu0 0.0
    %931 = vmatpush.msra.mxu0 0.0
    %932 = vmatpush.msra.mxu0 0.0
    %933 = vmatpush.msra.mxu0 0.0
    %934 = vmatpush.msra.mxu0 0.0
    %935 = vmatpush.msra.mxu0 0.0
    %936 = vmatpush.msra.mxu0 %v98
    %937 = vmatpush.msra.mxu0 %v97
    %938 = vmatpush.msra.mxu0 %v96
    %939 = vmatpush.msra.mxu0 %v95
    %940 = vmatmul.f32.gmra.mxu0 %v855
    %v941 = vpop.f32.mrf.mxu0
    %v942 = vadd.f32 0.0, %v941
    %943 = vdwg.mxu0
    %v944 = vadd.f32 %v133, %v942
    %v945 = vtanh.pop %v944
    %v946 = vmul.f32 %v945, %v124
    %v947 = vadd.f32 %v946, %v125
    %v948 = vmul.f32 %v947, %v845
    %950 = vrot.lane.b32.xlu0 %v947, 64
    %v951 = vpop.permute.xlu0 %950
    %v953 = vmul.f32 %v947, %v951
    %955 = vrot.lane.b32.xlu0 %v953, 32
    %v956 = vpop.permute.xlu0 %955
    %v958 = vadd.f32 %v948, %v956
    %v959 = vtanh.pop %v958
    %961 = vrot.lane.b32.xlu0 %v959, 64
    %v962 = vpop.permute.xlu0 %961
    %v964 = vmul.f32 %v947, %v962
    %966 = vrot.lane.b32.xlu0 %v964, 32
    %v967 = vpop.permute.xlu0 %966
    %v968 = vsel %vm134, %v967, 0
    %970 = vmatpush.msra.mxu0 0.0
    %971 = vmatpush.msra.mxu0 0.0
    %972 = vmatpush.msra.mxu0 0.0
    %973 = vmatpush.msra.mxu0 0.0
    %974 = vmatpush.msra.mxu0 0.0
    %975 = vmatpush.msra.mxu0 0.0
    %976 = vmatpush.msra.mxu0 0.0
    %977 = vmatpush.msra.mxu0 0.0
    %978 = vmatpush.msra.mxu0 0.0
    %979 = vmatpush.msra.mxu0 0.0
    %980 = vmatpush.msra.mxu0 0.0
    %981 = vmatpush.msra.mxu0 0.0
    %982 = vmatpush.msra.mxu0 %v106
    %983 = vmatpush.msra.mxu0 %v105
    %984 = vmatpush.msra.mxu0 %v104
    %985 = vmatpush.msra.mxu0 %v103
    %986 = vmatmul.f32.gmra.mxu0 %v968
    %v987 = vpop.f32.mrf.mxu0
    %v988 = vadd.f32 0.0, %v987
    %989 = vdwg.mxu0
    %v990 = vadd.f32 %v117, %v988
    %992 = vrot.lane.b32.xlu0 %v923, 32
    %v993 = vpop.permute.xlu0 %992
    %v994 = vsel %vm134, %v993, 0
    %996 = vmatpush.msra.mxu0 0.0
    %997 = vmatpush.msra.mxu0 0.0
    %998 = vmatpush.msra.mxu0 0.0
    %999 = vmatpush.msra.mxu0 0.0
    %1000 = vmatpush.msra.mxu0 0.0
    %1001 = vmatpush.msra.mxu0 0.0
    %1002 = vmatpush.msra.mxu0 0.0
    %1003 = vmatpush.msra.mxu0 0.0
    %1004 = vmatpush.msra.mxu0 0.0
    %1005 = vmatpush.msra.mxu0 0.0
    %1006 = vmatpush.msra.mxu0 0.0
    %1007 = vmatpush.msra.mxu0 0.0
    %1008 = vmatpush.msra.mxu0 %v114
    %1009 = vmatpush.msra.mxu0 %v113
    %1010 = vmatpush.msra.mxu0 %v112
    %1011 = vmatpush.msra.mxu0 %v111
    %1012 = vmatmul.f32.gmra.mxu0 %v994
    %v1013 = vpop.f32.mrf.mxu0
    %v1014 = vadd.f32 0.0, %v1013
    %1015 = vdwg.mxu0
    %v1016 = vadd.f32 %v990, %v1014
    %v1017 = vtanh.pop %v1016
    %v1018 = vmul.f32 %v1017, %v124
    %v1019 = vadd.f32 %v1018, %v125
    %v1020 = vmul.f32 %v1019, %v917
    %1022 = vrot.lane.b32.xlu0 %v1019, 64
    %v1023 = vpop.permute.xlu0 %1022
    %v1025 = vmul.f32 %v1019, %v1023
    %1027 = vrot.lane.b32.xlu0 %v1025, 32
    %v1028 = vpop.permute.xlu0 %1027
    %v1030 = vadd.f32 %v1020, %v1028
    %v1031 = vtanh.pop %v1030
    %1033 = vrot.lane.b32.xlu0 %v1031, 64
    %v1034 = vpop.permute.xlu0 %1033
    %v1036 = vmul.f32 %v1019, %v1034
    %v1037 = vld [vmem:[%s5] sm:$0x1]
    %v1039 = vperm.slane %v1037, 0
    %1040 = vrot.lane.b32.xlu0 %v1039, 96
    %v1041 = vpop.permute.xlu0 %1040
    %v1043 = vmul.f32 %v1036, %v1041
    %1045 = vrot.lane.b32.xlu0 %v1043, 32
    %v1046 = vpop.permute.xlu0 %1045
    %v1048 = vsel %vm134, %v1046, 0.0
    %1049 = vadd.xlane.f32.xlu0 %v1048
    %v1050 = vpop.xlane.xlu0 %1049
    %v1051 = vld [vmem:[#allocation2] sm:$0x1]
    %v1053 = vperm.slane %v1051, 0
    %v1055 = vadd.f32 %v1050, %v1053
    %vm1056 = vcmask 7168
    %1057 = vst.msk [vmem:[%s7] sm:$0xff] %vm1056, %v1055
    // Predicated region
    $region46: #{tpu_custom_call.1} parent=1 // pred_check
      _
    $region47: #{tpu_custom_call.1} parent=1 // pred_check_branch
      %1059 = sbr.rel (0) target = $region49
    $region48: #{tpu_custom_call.1} parent=1 // pred_region
      _
    $region49: #{tpu_custom_call.1} parent=1 // pred_fallthru
      _
    // Predicated region
    $region50: #{tpu_custom_call.1} parent=1 // pred_check
      _
    $region51: #{tpu_custom_call.1} parent=1 // pred_check_branch
      %1061 = sbr.rel (0) target = $region53
    $region52: #{tpu_custom_call.1} parent=1 // pred_region
      _
    $region53: #{tpu_custom_call.1} parent=1 // pred_fallthru
      _
    %1062 = vsyncpa [#allocation4], 1
    %1063 = vsyncpa [#allocation6], 1
    %1064 = vsyncpa [#allocation9], 1

</llo_original>
